<compile_context>
chip_gen: v7x
topology: tpu7x:2x2x1
jax: 0.10.0
libtpu: 0.0.40
codegen_flags: <defaults>
</compile_context>

<pallas_src>
import math
import functools

import jax
import jax.numpy as jnp
from jax import lax
from jax.experimental import pallas as pl
from jax.experimental.pallas import tpu as pltpu

GAUSSIAN_SCALER = 1.0 / math.sqrt(2.0 * math.pi)
LOG_2PI_HALF = -0.5 * math.log(2.0 * math.pi)


def _round_up(x, m):
    return (x + m - 1) // m * m


def _bnn_kernel(data_ref, wmu_ref, wrho_ref, epsw_ref,
                bmu_ref, brho_ref, epsb_ref,
                out_ref, lqw_ref, lpw_ref,
                acc_ref, lqw_acc_ref, lpw_acc_ref,
                *, n_input, n_output, tk, tn, pi, s1, s2, mixture, need_mask):
    n_id = pl.program_id(0)
    k_id = pl.program_id(1)
    num_n = pl.num_programs(0)
    num_k = pl.num_programs(1)

    # ---- Prior constants folded to Python floats at trace time. ----
    if mixture:
        # Matches the PyTorch call mixture_prior(x, pi, s2, s1):
        #   pi * N(x; 0, s2) + (1 - pi) * N(x; 0, s1)
        log_ca = math.log(pi * GAUSSIAN_SCALER / s2)
        log_cb = math.log((1.0 - pi) * GAUSSIAN_SCALER / s1)
        inv_2s2sq = 1.0 / (2.0 * s2 * s2)
        inv_2s1sq = 1.0 / (2.0 * s1 * s1)

        def log_prior(x2):
            a = log_ca - x2 * inv_2s2sq
            b = log_cb - x2 * inv_2s1sq
            m = jnp.maximum(a, b)
            return m + jnp.log1p(jnp.exp(-jnp.abs(a - b)))   # stable logaddexp
    else:
        const_g = LOG_2PI_HALF - math.log(abs(s1))
        inv_2s1sq = 1.0 / (2.0 * s1 * s1)

        def log_prior(x2):
            return const_g - x2 * inv_2s1sq

    # ---- Init accumulators. ----
    @pl.when(jnp.logical_and(n_id == 0, k_id == 0))
    def _init_scalars():
        lqw_acc_ref[...] = jnp.zeros_like(lqw_acc_ref)
        lpw_acc_ref[...] = jnp.zeros_like(lpw_acc_ref)

    @pl.when(k_id == 0)
    def _init_acc():
        acc_ref[...] = jnp.zeros_like(acc_ref)

    # ---- Weight tile: reparameterized sample (weights already in (K, N) layout). ----
    wmu = wmu_ref[...]
    wrho = wrho_ref[...]
    epsw = epsw_ref[...]
    e_rho = jnp.exp(wrho)              # exp(rho) computed once
    sigma_w = jnp.log1p(e_rho)         # softplus(rho)
    dev_w = sigma_w * epsw             # = W - mu
    W = wmu + dev_w                    # (tk, tn)

    # ---- Matmul accumulation on the MXU (no in-kernel transpose). ----
    acc_ref[...] += jnp.dot(data_ref[...], W, preferred_element_type=jnp.float32)

    # ---- KL terms for this weight tile (reduce immediately, accumulate scalar). ----
    lqw_t = LOG_2PI_HALF - wrho - (dev_w * dev_w) / (2.0 * e_rho * e_rho)
    lpw_t = log_prior(W * W)
    if need_mask:
        rows = k_id * tk + lax.broadcasted_iota(jnp.int32, (tk, tn), 0)
        cols = n_id * tn + lax.broadcasted_iota(jnp.int32, (tk, tn), 1)
        mask = jnp.logical_and(rows < n_input, cols < n_output)
        lqw_t = jnp.where(mask, lqw_t, 0.0)
        lpw_t = jnp.where(mask, lpw_t, 0.0)
    lqw_acc_ref[...] += jnp.sum(lqw_t, keepdims=True)
    lpw_acc_ref[...] += jnp.sum(lpw_t, keepdims=True)

    # ---- Bias + output writeback once per n-tile, at the last K step. ----
    @pl.when(k_id == num_k - 1)
    def _finish_tile():
        bmu = bmu_ref[...]       # (1, tn)
        brho = brho_ref[...]
        epsb = epsb_ref[...]
        e_brho = jnp.exp(brho)
        sigma_b = jnp.log1p(e_brho)
        dev_b = sigma_b * epsb
        b = bmu + dev_b
        out_ref[...] = (acc_ref[...] + b).astype(out_ref.dtype)

        lqw_b = LOG_2PI_HALF - brho - (dev_b * dev_b) / (2.0 * e_brho * e_brho)
        lpw_b = log_prior(b * b)
        if need_mask:
            bcols = n_id * tn + lax.broadcasted_iota(jnp.int32, (1, tn), 1)
            bmask = bcols < n_output
            lqw_b = jnp.where(bmask, lqw_b, 0.0)
            lpw_b = jnp.where(bmask, lpw_b, 0.0)
        lqw_acc_ref[...] += jnp.sum(lqw_b, keepdims=True)
        lpw_acc_ref[...] += jnp.sum(lpw_b, keepdims=True)

    # ---- Emit the scalar outputs once, at the very last grid step. ----
    @pl.when(jnp.logical_and(n_id == num_n - 1, k_id == num_k - 1))
    def _emit_scalars():
        lqw_ref[...] = lqw_acc_ref[...]
        lpw_ref[...] = lpw_acc_ref[...]


def bnn_layer_forward(data, weight_mu, weight_rho, bias_mu, bias_rho,
                      eps_W, eps_b, *, pi, s1, s2, mixture,
                      tile_n=512, tile_k=512):
    """Returns (output, lqw, lpw) matching BNNLayer.forward(data, infer=False)."""
    B, n_input = data.shape
    n_output = weight_mu.shape[0]
    f32 = jnp.float32

    # Tile sizes: multiples of 128 lanes, clamped so tiny layers use one tile.
    tn = min(tile_n, _round_up(n_output, 128))
    tk = min(tile_k, _round_up(n_input, 128))
    n_out_p = _round_up(n_output, tn)
    n_in_p = _round_up(n_input, tk)
    b_p = _round_up(B, 8)
    need_mask = (n_out_p != n_output) or (n_in_p != n_input)

    # One-time layout plumbing in the wrapper:
    #  * weights transposed to (n_input, n_output) so the kernel matmul is
    #    data @ W with no in-kernel relayout;
    #  * zero-padded to tile multiples (padding masked out of the KL sums).
    def pad_w(x):
        xt = x.astype(f32).T
        return jnp.zeros((n_in_p, n_out_p), f32).at[:n_input, :n_output].set(xt)

    def pad_vec(x):
        return jnp.zeros((1, n_out_p), f32).at[0, :n_output].set(x.astype(f32))

    data_p = jnp.zeros((b_p, n_in_p), f32).at[:B, :n_input].set(data.astype(f32))
    wmu_t, wrho_t, epsw_t = pad_w(weight_mu), pad_w(weight_rho), pad_w(eps_W)
    bmu2, brho2, epsb2 = pad_vec(bias_mu), pad_vec(bias_rho), pad_vec(eps_b)

    grid = (n_out_p // tn, n_in_p // tk)   # (N tiles, K tiles); reduction axis last.

    kernel = functools.partial(
        _bnn_kernel, n_input=n_input, n_output=n_output, tk=tk, tn=tn,
        pi=float(pi), s1=float(s1), s2=float(s2), mixture=bool(mixture),
        need_mask=need_mask)

    n_w = n_output * n_input
    cost = pl.CostEstimate(
        flops=2 * B * n_w,
        transcendentals=4 * (n_w + n_output),
        bytes_accessed=4 * (3 * n_w + B * n_input + B * n_output + 3 * n_output),
    )

    out_p, lqw, lpw = pl.pallas_call(
        kernel,
        grid=grid,
        in_specs=[
            pl.BlockSpec((b_p, tk), lambda n, k: (0, k)),    # data
            pl.BlockSpec((tk, tn), lambda n, k: (k, n)),     # weight_mu^T
            pl.BlockSpec((tk, tn), lambda n, k: (k, n)),     # weight_rho^T
            pl.BlockSpec((tk, tn), lambda n, k: (k, n)),     # eps_W^T
            pl.BlockSpec((1, tn), lambda n, k: (0, n)),      # bias_mu
            pl.BlockSpec((1, tn), lambda n, k: (0, n)),      # bias_rho
            pl.BlockSpec((1, tn), lambda n, k: (0, n)),      # eps_b
        ],
        out_specs=(
            pl.BlockSpec((b_p, tn), lambda n, k: (0, n)),    # output
            pl.BlockSpec((1, 1), lambda n, k: (0, 0)),       # lqw (scalar)
            pl.BlockSpec((1, 1), lambda n, k: (0, 0)),       # lpw (scalar)
        ),
        out_shape=(
            jax.ShapeDtypeStruct((b_p, n_out_p), f32),
            jax.ShapeDtypeStruct((1, 1), f32),
            jax.ShapeDtypeStruct((1, 1), f32),
        ),
        scratch_shapes=[
            pltpu.VMEM((b_p, tn), f32),   # matmul accumulator over K
            pltpu.VMEM((1, 1), f32),      # lqw accumulator (whole grid)
            pltpu.VMEM((1, 1), f32),      # lpw accumulator (whole grid)
        ],
        compiler_params=pltpu.CompilerParams(
            # lqw/lpw are accumulated across the WHOLE grid (their output block
            # is revisited along both axes), so both axes must be "arbitrary".
            dimension_semantics=("arbitrary", "arbitrary"),
            vmem_limit_bytes=32 * 1024 * 1024,
        ),
        cost_estimate=cost,
    )(data_p, wmu_t, wrho_t, epsw_t, bmu2, brho2, epsb2)

    return out_p[:B, :n_output], lqw[0, 0], lpw[0, 0]


# ----------------------------- pure-JAX reference -----------------------------
def _reference(data, wmu, wrho, bmu, brho, eps_W, eps_b, pi, s1, s2, mixture):
    sw = jnp.log1p(jnp.exp(wrho))
    sb = jnp.log1p(jnp.exp(brho))
    W = wmu + sw * eps_W
    b = bmu + sb * eps_b
    out = data @ W.T + b

    def lgr(x, mu, rho):
        return LOG_2PI_HALF - rho - (x - mu) ** 2 / (2.0 * jnp.exp(rho) ** 2)

    lqw = jnp.sum(lgr(W, wmu, wrho)) + jnp.sum(lgr(b, bmu, brho))
    if mixture:
        def mp(x):  # mixture_prior(x, pi, s2, s1) semantics
            g_a = GAUSSIAN_SCALER / s2 * jnp.exp(-(x ** 2) / (2.0 * s2 ** 2))
            g_b = GAUSSIAN_SCALER / s1 * jnp.exp(-(x ** 2) / (2.0 * s1 ** 2))
            return jnp.log(pi * g_a + (1.0 - pi) * g_b)
        lpw = jnp.sum(mp(W)) + jnp.sum(mp(b))
    else:
        const = LOG_2PI_HALF - math.log(abs(s1))
        lpw = (jnp.sum(const - W ** 2 / (2.0 * s1 ** 2))
               + jnp.sum(const - b ** 2 / (2.0 * s1 ** 2)))
    return out, lqw, lpw


def _make_inputs(key, B, n_input, n_output, rho_init):
    k_data, k_wmu, k_bmu, k_wrho, k_brho, k_epsw, k_epsb = jax.random.split(key, 7)
    fan_in = n_input
    kaiming_bound = math.sqrt(6.0 / fan_in)
    weight_mu = jax.random.uniform(k_wmu, (n_output, n_input), jnp.float32,
                                   -kaiming_bound, kaiming_bound)
    bias_bound = 1.0 / math.sqrt(fan_in)
    bias_mu = jax.random.uniform(k_bmu, (n_output,), jnp.float32,
                                 -bias_bound, bias_bound)
    weight_rho = rho_init + 0.05 * jax.random.normal(k_wrho, (n_output, n_input), jnp.float32)
    bias_rho = rho_init + 0.05 * jax.random.normal(k_brho, (n_output,), jnp.float32)
    eps_W = jax.random.normal(k_epsw, (n_output, n_input), jnp.float32)
    eps_b = jax.random.normal(k_epsb, (n_output,), jnp.float32)
    data = jax.random.normal(k_data, (B, n_input), jnp.float32)
    return data, weight_mu, weight_rho, bias_mu, bias_rho, eps_W, eps_b


if __name__ == "__main__":
    PI, S1, S2, RHO_INIT = 0.5, 1.0, 0.1, -3.0
    key = jax.random.PRNGKey(0)
    k1, k2 = jax.random.split(key)

    # Case 1: small aligned-ish layer (single tile after padding), mixture prior.
    B, NI, NO = 8, 32, 16
    args1 = _make_inputs(k1, B, NI, NO, RHO_INIT)
    out1, lqw1, lpw1 = bnn_layer_forward(*args1, pi=PI, s1=S1, s2=S2, mixture=True)
    jax.block_until_ready((out1, lqw1, lpw1))
    ro1, rq1, rp1 = _reference(*args1, pi=PI, s1=S1, s2=S2, mixture=True)

    assert out1.shape == (B, NO)
    assert jnp.allclose(out1, ro1, atol=1e-4, rtol=1e-4)
    assert abs(float(lqw1 - rq1)) <= 1e-3 * abs(float(rq1)) + 1e-2
    assert abs(float(lpw1 - rp1)) <= 1e-3 * abs(float(rp1)) + 1e-2

    # Case 2: non-aligned layer exercising a (2, 3) grid, padding masks, and the
    # single-gaussian prior branch.
    B2, NI2, NO2 = 8, 300, 200
    args2 = _make_inputs(k2, B2, NI2, NO2, RHO_INIT)
    out2, lqw2, lpw2 = bnn_layer_forward(*args2, pi=PI, s1=S1, s2=S2,
                                         mixture=False, tile_n=128, tile_k=128)
    jax.block_until_ready((out2, lqw2, lpw2))
    ro2, rq2, rp2 = _reference(*args2, pi=PI, s1=S1, s2=S2, mixture=False)

    assert out2.shape == (B2, NO2)
    assert jnp.allclose(out2, ro2, atol=1e-3, rtol=1e-4)
    assert abs(float(lqw2 - rq2)) <= 1e-3 * abs(float(rq2)) + 5e-2
    assert abs(float(lpw2 - rp2)) <= 1e-3 * abs(float(rp2)) + 5e-2
    assert jnp.isfinite(lqw1) and jnp.isfinite(lpw1)
    assert jnp.isfinite(lqw2) and jnp.isfinite(lpw2)

    # TODO(synk): infer=True path (plain F.linear with the means) is trivial and
    # left to standard jnp.dot outside this kernel.
    print("KERNEL_OK")
</pallas_src>

<mosaic_0001>
module attributes {stable_mosaic.version = 11 : i64} {
  func.func @_bnn_kernel(%arg0: i32, %arg1: i32, %arg2: memref<8x128xf32, #tpu.memory_space<vmem>>, %arg3: memref<128x128xf32, #tpu.memory_space<vmem>>, %arg4: memref<128x128xf32, #tpu.memory_space<vmem>>, %arg5: memref<128x128xf32, #tpu.memory_space<vmem>>, %arg6: memref<1x128xf32, #tpu.memory_space<vmem>>, %arg7: memref<1x128xf32, #tpu.memory_space<vmem>>, %arg8: memref<1x128xf32, #tpu.memory_space<vmem>>, %arg9: memref<8x128xf32, #tpu.memory_space<vmem>>, %arg10: memref<1x1xf32, #tpu.memory_space<vmem>>, %arg11: memref<1x1xf32, #tpu.memory_space<vmem>>, %arg12: memref<8x128xf32, #tpu.memory_space<vmem>>, %arg13: memref<1x1xf32, #tpu.memory_space<vmem>>, %arg14: memref<1x1xf32, #tpu.memory_space<vmem>>) attributes {dimension_semantics = [#tpu.dimension_semantics<arbitrary>, #tpu.dimension_semantics<arbitrary>], iteration_bounds = array<i64: 1, 1>, scalar_prefetch = 0 : i64, scratch_operands = 3 : i64, tpu.core_type = #tpu.core_type<tc>, window_params = [{transform_indices = @transform_0, window_bounds = array<i64: 8, 128>}, {transform_indices = @transform_1, window_bounds = array<i64: 128, 128>}, {transform_indices = @transform_2, window_bounds = array<i64: 128, 128>}, {transform_indices = @transform_3, window_bounds = array<i64: 128, 128>}, {transform_indices = @transform_4, window_bounds = array<i64: 1, 128>}, {transform_indices = @transform_5, window_bounds = array<i64: 1, 128>}, {transform_indices = @transform_6, window_bounds = array<i64: 1, 128>}, {transform_indices = @transform_7, window_bounds = array<i64: 8, 128>}, {pipeline_mode = #tpu.pipeline_mode<synchronous>, transform_indices = @transform_8, window_bounds = array<i64: 1, 1>}, {pipeline_mode = #tpu.pipeline_mode<synchronous>, transform_indices = @transform_9, window_bounds = array<i64: 1, 1>}]} {
    %c0_i32 = arith.constant 0 : i32
    %0 = arith.cmpi eq, %arg0, %c0_i32 : i32
    %c0_i32_0 = arith.constant 0 : i32
    %1 = arith.cmpi eq, %arg1, %c0_i32_0 : i32
    %2 = arith.andi %0, %1 : i1
    %3 = arith.extui %2 : i1 to i32
    %c0_i32_1 = arith.constant 0 : i32
    %4 = arith.cmpi ne, %3, %c0_i32_1 : i32
    scf.if %4 {
      %cst_40 = arith.constant 0.000000e+00 : f32
      %86 = vector.broadcast %cst_40 : f32 to vector<1x1xf32>
      %c0_41 = arith.constant 0 : index
      %c0_42 = arith.constant 0 : index
      %87 = vector.load %arg13[%c0_41, %c0_42] : memref<1x1xf32, #tpu.memory_space<vmem>>, vector<1x1xf32>
      tpu.vector_store %arg13[%c0_41, %c0_42], %86 {strides = array<i32>} : memref<1x1xf32, #tpu.memory_space<vmem>>, vector<1x1xf32>,
      %cst_43 = arith.constant 0.000000e+00 : f32
      %88 = vector.broadcast %cst_43 : f32 to vector<1x1xf32>
      %c0_44 = arith.constant 0 : index
      %c0_45 = arith.constant 0 : index
      %89 = vector.load %arg14[%c0_44, %c0_45] : memref<1x1xf32, #tpu.memory_space<vmem>>, vector<1x1xf32>
      tpu.vector_store %arg14[%c0_44, %c0_45], %88 {strides = array<i32>} : memref<1x1xf32, #tpu.memory_space<vmem>>, vector<1x1xf32>,
    } else {
    }
    %c0_i32_2 = arith.constant 0 : i32
    %5 = arith.cmpi eq, %arg1, %c0_i32_2 : i32
    %6 = arith.extui %5 : i1 to i32
    %c0_i32_3 = arith.constant 0 : i32
    %7 = arith.cmpi ne, %6, %c0_i32_3 : i32
    scf.if %7 {
      %cst_40 = arith.constant 0.000000e+00 : f32
      %86 = vector.broadcast %cst_40 : f32 to vector<8x128xf32>
      %c0_41 = arith.constant 0 : index
      %c0_42 = arith.constant 0 : index
      %87 = vector.load %arg12[%c0_41, %c0_42] : memref<8x128xf32, #tpu.memory_space<vmem>>, vector<8x128xf32>
      tpu.vector_store %arg12[%c0_41, %c0_42], %86 {strides = array<i32>} : memref<8x128xf32, #tpu.memory_space<vmem>>, vector<8x128xf32>,
    } else {
    }
    %c0 = arith.constant 0 : index
    %c0_4 = arith.constant 0 : index
    %8 = vector.load %arg3[%c0, %c0_4] : memref<128x128xf32, #tpu.memory_space<vmem>>, vector<128x128xf32>
    %c0_5 = arith.constant 0 : index
    %c0_6 = arith.constant 0 : index
    %9 = vector.load %arg4[%c0_5, %c0_6] : memref<128x128xf32, #tpu.memory_space<vmem>>, vector<128x128xf32>
    %c0_7 = arith.constant 0 : index
    %c0_8 = arith.constant 0 : index
    %10 = vector.load %arg5[%c0_7, %c0_8] : memref<128x128xf32, #tpu.memory_space<vmem>>, vector<128x128xf32>
    %11 = math.exp %9 : vector<128x128xf32>
    %12 = math.log1p %11 : vector<128x128xf32>
    %13 = arith.mulf %12, %10 : vector<128x128xf32>
    %14 = arith.addf %8, %13 : vector<128x128xf32>
    %c0_9 = arith.constant 0 : index
    %c0_10 = arith.constant 0 : index
    %15 = vector.load %arg12[%c0_9, %c0_10] : memref<8x128xf32, #tpu.memory_space<vmem>>, vector<8x128xf32>
    %c0_11 = arith.constant 0 : index
    %c0_12 = arith.constant 0 : index
    %16 = vector.load %arg2[%c0_11, %c0_12] : memref<8x128xf32, #tpu.memory_space<vmem>>, vector<8x128xf32>
    %cst = arith.constant dense<0.000000e+00> : vector<8x128xf32>
    %17 = tpu.matmul %16, %14, %cst {dimension_numbers = #tpu.dot_dimension_numbers<[1], [0], [0], [1], [0, 0, 1, 1], [], []>} : vector<8x128xf32>, vector<128x128xf32>, vector<8x128xf32> -> vector<8x128xf32>
    %18 = arith.addf %15, %17 : vector<8x128xf32>
    %c0_13 = arith.constant 0 : index
    %c0_14 = arith.constant 0 : index
    %19 = vector.load %arg12[%c0_13, %c0_14] : memref<8x128xf32, #tpu.memory_space<vmem>>, vector<8x128xf32>
    tpu.vector_store %arg12[%c0_13, %c0_14], %18 {strides = array<i32>} : memref<8x128xf32, #tpu.memory_space<vmem>>, vector<8x128xf32>,
    %cst_15 = arith.constant -0.918938517 : f32
    %20 = vector.broadcast %cst_15 : f32 to vector<128x128xf32>
    %21 = arith.subf %20, %9 : vector<128x128xf32>
    %22 = arith.mulf %13, %13 : vector<128x128xf32>
    %cst_16 = arith.constant 2.000000e+00 : f32
    %23 = vector.broadcast %cst_16 : f32 to vector<128x128xf32>
    %24 = arith.mulf %23, %11 : vector<128x128xf32>
    %25 = arith.mulf %24, %11 : vector<128x128xf32>
    %26 = arith.divf %22, %25 : vector<128x128xf32>
    %27 = arith.subf %21, %26 : vector<128x128xf32>
    %28 = arith.mulf %14, %14 : vector<128x128xf32>
    %cst_17 = arith.constant 5.000000e+01 : f32
    %29 = vector.broadcast %cst_17 : f32 to vector<128x128xf32>
    %30 = arith.mulf %28, %29 : vector<128x128xf32>
    %cst_18 = arith.constant 0.690499365 : f32
    %31 = vector.broadcast %cst_18 : f32 to vector<128x128xf32>
    %32 = arith.subf %31, %30 : vector<128x128xf32>
    %cst_19 = arith.constant 5.000000e-01 : f32
    %33 = vector.broadcast %cst_19 : f32 to vector<128x128xf32>
    %34 = arith.mulf %28, %33 : vector<128x128xf32>
    %cst_20 = arith.constant -1.6120857 : f32
    %35 = vector.broadcast %cst_20 : f32 to vector<128x128xf32>
    %36 = arith.subf %35, %34 : vector<128x128xf32>
    %37 = arith.maximumf %32, %36 : vector<128x128xf32>
    %38 = arith.subf %32, %36 : vector<128x128xf32>
    %39 = math.absf %38 : vector<128x128xf32>
    %cst_21 = arith.constant 0.000000e+00 : f32
    %40 = vector.broadcast %cst_21 : f32 to vector<128x128xf32>
    %41 = arith.subf %40, %39 : vector<128x128xf32>
    %42 = math.exp %41 : vector<128x128xf32>
    %43 = math.log1p %42 : vector<128x128xf32>
    %44 = arith.addf %37, %43 : vector<128x128xf32>
    %c128_i32 = arith.constant 128 : i32
    %45 = arith.muli %arg1, %c128_i32 : i32
    %46 = tpu.iota {dimensions = array<i32: 0>} : vector<128x128xi32>
    %47 = vector.broadcast %45 : i32 to vector<128x128xi32>
    %48 = arith.addi %47, %46 : vector<128x128xi32>
    %c128_i32_22 = arith.constant 128 : i32
    %49 = arith.muli %arg0, %c128_i32_22 : i32
    %50 = tpu.iota {dimensions = array<i32: 1>} : vector<128x128xi32>
    %51 = vector.broadcast %49 : i32 to vector<128x128xi32>
    %52 = arith.addi %51, %50 : vector<128x128xi32>
    %c32_i32 = arith.constant 32 : i32
    %53 = vector.broadcast %c32_i32 : i32 to vector<128x128xi32>
    %54 = arith.cmpi slt, %48, %53 : vector<128x128xi32>
    %c16_i32 = arith.constant 16 : i32
    %55 = vector.broadcast %c16_i32 : i32 to vector<128x128xi32>
    %56 = arith.cmpi slt, %52, %55 : vector<128x128xi32>
    %57 = arith.andi %54, %56 : vector<128x128xi1>
    %cst_23 = arith.constant 0.000000e+00 : f32
    %58 = vector.broadcast %cst_23 : f32 to vector<128x128xf32>
    %59 = arith.select %57, %27, %58 : vector<128x128xi1>, vector<128x128xf32>
    %cst_24 = arith.constant 0.000000e+00 : f32
    %60 = vector.broadcast %cst_24 : f32 to vector<128x128xf32>
    %61 = arith.select %57, %44, %60 : vector<128x128xi1>, vector<128x128xf32>
    %c0_25 = arith.constant 0 : index
    %c0_26 = arith.constant 0 : index
    %62 = vector.load %arg13[%c0_25, %c0_26] : memref<1x1xf32, #tpu.memory_space<vmem>>, vector<1x1xf32>
    %63 = vector.shape_cast %59 : vector<128x128xf32> to vector<1x128x128xf32>
    %cst_27 = arith.constant dense<0.000000e+00> : vector<1xf32>
    %64 = vector.multi_reduction <add>, %63, %cst_27 [1, 2] : vector<1x128x128xf32> to vector<1xf32>
    %65 = vector.shape_cast %64 : vector<1xf32> to vector<1x1x1xf32>
    %66 = vector.extract %65[0, 0, 0] : f32 from vector<1x1x1xf32>
    %67 = vector.broadcast %66 : f32 to vector<1x1xf32>
    %68 = arith.addf %62, %67 : vector<1x1xf32>
    %c0_28 = arith.constant 0 : index
    %c0_29 = arith.constant 0 : index
    %69 = vector.load %arg13[%c0_28, %c0_29] : memref<1x1xf32, #tpu.memory_space<vmem>>, vector<1x1xf32>
    tpu.vector_store %arg13[%c0_28, %c0_29], %68 {strides = array<i32>} : memref<1x1xf32, #tpu.memory_space<vmem>>, vector<1x1xf32>,
    %c0_30 = arith.constant 0 : index
    %c0_31 = arith.constant 0 : index
    %70 = vector.load %arg14[%c0_30, %c0_31] : memref<1x1xf32, #tpu.memory_space<vmem>>, vector<1x1xf32>
    %71 = vector.shape_cast %61 : vector<128x128xf32> to vector<1x128x128xf32>
    %cst_32 = arith.constant dense<0.000000e+00> : vector<1xf32>
    %72 = vector.multi_reduction <add>, %71, %cst_32 [1, 2] : vector<1x128x128xf32> to vector<1xf32>
    %73 = vector.shape_cast %72 : vector<1xf32> to vector<1x1x1xf32>
    %74 = vector.extract %73[0, 0, 0] : f32 from vector<1x1x1xf32>
    %75 = vector.broadcast %74 : f32 to vector<1x1xf32>
    %76 = arith.addf %70, %75 : vector<1x1xf32>
    %c0_33 = arith.constant 0 : index
    %c0_34 = arith.constant 0 : index
    %77 = vector.load %arg14[%c0_33, %c0_34] : memref<1x1xf32, #tpu.memory_space<vmem>>, vector<1x1xf32>
    tpu.vector_store %arg14[%c0_33, %c0_34], %76 {strides = array<i32>} : memref<1x1xf32, #tpu.memory_space<vmem>>, vector<1x1xf32>,
    %c0_i32_35 = arith.constant 0 : i32
    %78 = arith.cmpi eq, %arg1, %c0_i32_35 : i32
    %79 = arith.extui %78 : i1 to i32
    %c0_i32_36 = arith.constant 0 : i32
    %80 = arith.cmpi ne, %79, %c0_i32_36 : i32
    scf.if %80 {
      %c0_40 = arith.constant 0 : index
      %c0_41 = arith.constant 0 : index
      %86 = vector.load %arg6[%c0_40, %c0_41] : memref<1x128xf32, #tpu.memory_space<vmem>>, vector<1x128xf32>
      %c0_42 = arith.constant 0 : index
      %c0_43 = arith.constant 0 : index
      %87 = vector.load %arg7[%c0_42, %c0_43] : memref<1x128xf32, #tpu.memory_space<vmem>>, vector<1x128xf32>
      %c0_44 = arith.constant 0 : index
      %c0_45 = arith.constant 0 : index
      %88 = vector.load %arg8[%c0_44, %c0_45] : memref<1x128xf32, #tpu.memory_space<vmem>>, vector<1x128xf32>
      %89 = math.exp %87 : vector<1x128xf32>
      %90 = math.log1p %89 : vector<1x128xf32>
      %91 = arith.mulf %90, %88 : vector<1x128xf32>
      %92 = arith.addf %86, %91 : vector<1x128xf32>
      %c0_46 = arith.constant 0 : index
      %c0_47 = arith.constant 0 : index
      %93 = vector.load %arg12[%c0_46, %c0_47] : memref<8x128xf32, #tpu.memory_space<vmem>>, vector<8x128xf32>
      %94 = vector.broadcast %92 : vector<1x128xf32> to vector<8x128xf32>
      %95 = arith.addf %93, %94 : vector<8x128xf32>
      %c0_48 = arith.constant 0 : index
      %c0_49 = arith.constant 0 : index
      %96 = vector.load %arg9[%c0_48, %c0_49] : memref<8x128xf32, #tpu.memory_space<vmem>>, vector<8x128xf32>
      tpu.vector_store %arg9[%c0_48, %c0_49], %95 {strides = array<i32>} : memref<8x128xf32, #tpu.memory_space<vmem>>, vector<8x128xf32>,
      %cst_50 = arith.constant -0.918938517 : f32
      %97 = vector.broadcast %cst_50 : f32 to vector<1x128xf32>
      %98 = arith.subf %97, %87 : vector<1x128xf32>
      %99 = arith.mulf %91, %91 : vector<1x128xf32>
      %cst_51 = arith.constant 2.000000e+00 : f32
      %100 = vector.broadcast %cst_51 : f32 to vector<1x128xf32>
      %101 = arith.mulf %100, %89 : vector<1x128xf32>
      %102 = arith.mulf %101, %89 : vector<1x128xf32>
      %103 = arith.divf %99, %102 : vector<1x128xf32>
      %104 = arith.subf %98, %103 : vector<1x128xf32>
      %105 = arith.mulf %92, %92 : vector<1x128xf32>
      %cst_52 = arith.constant 5.000000e+01 : f32
      %106 = vector.broadcast %cst_52 : f32 to vector<1x128xf32>
      %107 = arith.mulf %105, %106 : vector<1x128xf32>
      %cst_53 = arith.constant 0.690499365 : f32
      %108 = vector.broadcast %cst_53 : f32 to vector<1x128xf32>
      %109 = arith.subf %108, %107 : vector<1x128xf32>
      %cst_54 = arith.constant 5.000000e-01 : f32
      %110 = vector.broadcast %cst_54 : f32 to vector<1x128xf32>
      %111 = arith.mulf %105, %110 : vector<1x128xf32>
      %cst_55 = arith.constant -1.6120857 : f32
      %112 = vector.broadcast %cst_55 : f32 to vector<1x128xf32>
      %113 = arith.subf %112, %111 : vector<1x128xf32>
      %114 = arith.maximumf %109, %113 : vector<1x128xf32>
      %115 = arith.subf %109, %113 : vector<1x128xf32>
      %116 = math.absf %115 : vector<1x128xf32>
      %cst_56 = arith.constant 0.000000e+00 : f32
      %117 = vector.broadcast %cst_56 : f32 to vector<1x128xf32>
      %118 = arith.subf %117, %116 : vector<1x128xf32>
      %119 = math.exp %118 : vector<1x128xf32>
      %120 = math.log1p %119 : vector<1x128xf32>
      %121 = arith.addf %114, %120 : vector<1x128xf32>
      %c128_i32_57 = arith.constant 128 : i32
      %122 = arith.muli %arg0, %c128_i32_57 : i32
      %123 = tpu.iota {dimensions = array<i32: 1>} : vector<1x128xi32>
      %124 = vector.broadcast %122 : i32 to vector<1x128xi32>
      %125 = arith.addi %124, %123 : vector<1x128xi32>
      %c16_i32_58 = arith.constant 16 : i32
      %126 = vector.broadcast %c16_i32_58 : i32 to vector<1x128xi32>
      %127 = arith.cmpi slt, %125, %126 : vector<1x128xi32>
      %cst_59 = arith.constant 0.000000e+00 : f32
      %128 = vector.broadcast %cst_59 : f32 to vector<1x128xf32>
      %129 = arith.select %127, %104, %128 : vector<1x128xi1>, vector<1x128xf32>
      %cst_60 = arith.constant 0.000000e+00 : f32
      %130 = vector.broadcast %cst_60 : f32 to vector<1x128xf32>
      %131 = arith.select %127, %121, %130 : vector<1x128xi1>, vector<1x128xf32>
      %c0_61 = arith.constant 0 : index
      %c0_62 = arith.constant 0 : index
      %132 = vector.load %arg13[%c0_61, %c0_62] : memref<1x1xf32, #tpu.memory_space<vmem>>, vector<1x1xf32>
      %133 = vector.shape_cast %129 : vector<1x128xf32> to vector<1x1x128xf32>
      %cst_63 = arith.constant dense<0.000000e+00> : vector<1xf32>
      %134 = vector.multi_reduction <add>, %133, %cst_63 [1, 2] : vector<1x1x128xf32> to vector<1xf32>
      %135 = vector.shape_cast %134 : vector<1xf32> to vector<1x1x1xf32>
      %136 = vector.extract %135[0, 0, 0] : f32 from vector<1x1x1xf32>
      %137 = vector.broadcast %136 : f32 to vector<1x1xf32>
      %138 = arith.addf %132, %137 : vector<1x1xf32>
      %c0_64 = arith.constant 0 : index
      %c0_65 = arith.constant 0 : index
      %139 = vector.load %arg13[%c0_64, %c0_65] : memref<1x1xf32, #tpu.memory_space<vmem>>, vector<1x1xf32>
      tpu.vector_store %arg13[%c0_64, %c0_65], %138 {strides = array<i32>} : memref<1x1xf32, #tpu.memory_space<vmem>>, vector<1x1xf32>,
      %c0_66 = arith.constant 0 : index
      %c0_67 = arith.constant 0 : index
      %140 = vector.load %arg14[%c0_66, %c0_67] : memref<1x1xf32, #tpu.memory_space<vmem>>, vector<1x1xf32>
      %141 = vector.shape_cast %131 : vector<1x128xf32> to vector<1x1x128xf32>
      %cst_68 = arith.constant dense<0.000000e+00> : vector<1xf32>
      %142 = vector.multi_reduction <add>, %141, %cst_68 [1, 2] : vector<1x1x128xf32> to vector<1xf32>
      %143 = vector.shape_cast %142 : vector<1xf32> to vector<1x1x1xf32>
      %144 = vector.extract %143[0, 0, 0] : f32 from vector<1x1x1xf32>
      %145 = vector.broadcast %144 : f32 to vector<1x1xf32>
      %146 = arith.addf %140, %145 : vector<1x1xf32>
      %c0_69 = arith.constant 0 : index
      %c0_70 = arith.constant 0 : index
      %147 = vector.load %arg14[%c0_69, %c0_70] : memref<1x1xf32, #tpu.memory_space<vmem>>, vector<1x1xf32>
      tpu.vector_store %arg14[%c0_69, %c0_70], %146 {strides = array<i32>} : memref<1x1xf32, #tpu.memory_space<vmem>>, vector<1x1xf32>,
    } else {
    }
    %c0_i32_37 = arith.constant 0 : i32
    %81 = arith.cmpi eq, %arg0, %c0_i32_37 : i32
    %c0_i32_38 = arith.constant 0 : i32
    %82 = arith.cmpi eq, %arg1, %c0_i32_38 : i32
    %83 = arith.andi %81, %82 : i1
    %84 = arith.extui %83 : i1 to i32
    %c0_i32_39 = arith.constant 0 : i32
    %85 = arith.cmpi ne, %84, %c0_i32_39 : i32
    scf.if %85 {
      %c0_40 = arith.constant 0 : index
      %c0_41 = arith.constant 0 : index
      %86 = vector.load %arg13[%c0_40, %c0_41] : memref<1x1xf32, #tpu.memory_space<vmem>>, vector<1x1xf32>
      %c0_42 = arith.constant 0 : index
      %c0_43 = arith.constant 0 : index
      %87 = vector.load %arg10[%c0_42, %c0_43] : memref<1x1xf32, #tpu.memory_space<vmem>>, vector<1x1xf32>
      tpu.vector_store %arg10[%c0_42, %c0_43], %86 {strides = array<i32>} : memref<1x1xf32, #tpu.memory_space<vmem>>, vector<1x1xf32>,
      %c0_44 = arith.constant 0 : index
      %c0_45 = arith.constant 0 : index
      %88 = vector.load %arg14[%c0_44, %c0_45] : memref<1x1xf32, #tpu.memory_space<vmem>>, vector<1x1xf32>
      %c0_46 = arith.constant 0 : index
      %c0_47 = arith.constant 0 : index
      %89 = vector.load %arg11[%c0_46, %c0_47] : memref<1x1xf32, #tpu.memory_space<vmem>>, vector<1x1xf32>
      tpu.vector_store %arg11[%c0_46, %c0_47], %88 {strides = array<i32>} : memref<1x1xf32, #tpu.memory_space<vmem>>, vector<1x1xf32>,
    } else {
    }
    return
  }
  func.func @transform_0(%arg0: i32, %arg1: i32) -> (i32, i32) {
    %c0_i32 = arith.constant 0 : i32
    %c0_i32_0 = arith.constant 0 : i32
    return %c0_i32, %arg1 : i32, i32
  }
  func.func @transform_1(%arg0: i32, %arg1: i32) -> (i32, i32) {
    %c0_i32 = arith.constant 0 : i32
    return %arg1, %arg0 : i32, i32
  }
  func.func @transform_2(%arg0: i32, %arg1: i32) -> (i32, i32) {
    %c0_i32 = arith.constant 0 : i32
    return %arg1, %arg0 : i32, i32
  }
  func.func @transform_3(%arg0: i32, %arg1: i32) -> (i32, i32) {
    %c0_i32 = arith.constant 0 : i32
    return %arg1, %arg0 : i32, i32
  }
  func.func @transform_4(%arg0: i32, %arg1: i32) -> (i32, i32) {
    %c0_i32 = arith.constant 0 : i32
    %c0_i32_0 = arith.constant 0 : i32
    return %c0_i32, %arg0 : i32, i32
  }
  func.func @transform_5(%arg0: i32, %arg1: i32) -> (i32, i32) {
    %c0_i32 = arith.constant 0 : i32
    %c0_i32_0 = arith.constant 0 : i32
    return %c0_i32, %arg0 : i32, i32
  }
  func.func @transform_6(%arg0: i32, %arg1: i32) -> (i32, i32) {
    %c0_i32 = arith.constant 0 : i32
    %c0_i32_0 = arith.constant 0 : i32
    return %c0_i32, %arg0 : i32, i32
  }
  func.func @transform_7(%arg0: i32, %arg1: i32) -> (i32, i32) {
    %c0_i32 = arith.constant 0 : i32
    %c0_i32_0 = arith.constant 0 : i32
    return %c0_i32, %arg0 : i32, i32
  }
  func.func @transform_8(%arg0: i32, %arg1: i32) -> (i32, i32) {
    %c0_i32 = arith.constant 0 : i32
    %c0_i32_0 = arith.constant 0 : i32
    %c0_i32_1 = arith.constant 0 : i32
    return %c0_i32, %c0_i32_0 : i32, i32
  }
  func.func @transform_9(%arg0: i32, %arg1: i32) -> (i32, i32) {
    %c0_i32 = arith.constant 0 : i32
    %c0_i32_0 = arith.constant 0 : i32
    %c0_i32_1 = arith.constant 0 : i32
    return %c0_i32, %c0_i32_0 : i32, i32
  }
}

</mosaic_0001>

<llo_original>
// kernel: tpu_custom_call.1
$region0: #{tpu_custom_call.1}
  #allocation0 [shape = 'u32[]', space=smem, size = 0x4, offset = 0x4, fixed_abs, tag = 'smem constant byte address 0x4 - core index']
  #allocation1 [shape = 'u32[144,128]{1,0:T(1,128)}', space=vmem, size = 0x12000, scoped, tag = 'internal scratch']
  #allocation2 [shape = 'f32[8,128]{1,0:T(8,128)}', space=vmem, size = 0x1000, scoped, tag = 'scratch operand']
  #allocation3 [shape = 'f32[1,1]{1,0:T(1,128)}', space=vmem, size = 0x200, scoped, tag = 'scratch operand']
  #allocation4 [shape = 'f32[1,1]{1,0:T(1,128)}', space=vmem, size = 0x200, scoped, tag = 'scratch operand']
  %s0 = inlined_call_operand.hbm [shape: f32[8,128], index: 0, kind: input, shape index: {}]
  %s1 = inlined_call_operand.hbm [shape: f32[128,128], index: 1, kind: input, shape index: {}]
  %s2 = inlined_call_operand.hbm [shape: f32[128,128], index: 2, kind: input, shape index: {}]
  %s3 = inlined_call_operand.hbm [shape: f32[128,128], index: 3, kind: input, shape index: {}]
  %s4 = inlined_call_operand.vmem [shape: f32[1,128], index: 4, kind: input, shape index: {}]
  %s5 = inlined_call_operand.vmem [shape: f32[1,128], index: 5, kind: input, shape index: {}]
  %s6 = inlined_call_operand.vmem [shape: f32[1,128], index: 6, kind: input, shape index: {}]
  %s7 = inlined_call_operand.hbm [shape: f32[8,128], index: 7, kind: output, shape index: {0}]
  %s8 = inlined_call_operand.hbm [shape: f32[1,1], index: 8, kind: output, shape index: {1}]
  %s9 = inlined_call_operand.hbm [shape: f32[1,1], index: 9, kind: output, shape index: {2}]
  %10 = xla_tuple %s7, %s8, %s9
  %s11 = sld [smem:[#allocation0]]
  $region86: #{tpu_custom_call.1} parent=0
    _
  %s13 = ssub.s32 1, %s11
  %s14 = scalar_select 0, %s13, %s11
  $region1: #{tpu_custom_call.1} parent=0
    #allocation5 [shape = 'u8[4096]{0}', space=vmem, size = 0x1000, scoped, tag = 'input window, operand 0, single buffered']
    #allocation6 [shape = 's32[1]{0}', space=sflag, size = 0x4, scoped, tag = 'scoped memory for tpu_custom_call.1']
    #allocation7 [shape = 's32[1]{0}', space=sflag, size = 0x4, scoped, tag = 'scoped memory for tpu_custom_call.1']
    #allocation8 [shape = 'u8[65536]{0}', space=vmem, size = 0x10000, scoped, tag = 'input window, operand 1, single buffered']
    #allocation9 [shape = 's32[1]{0}', space=sflag, size = 0x4, scoped, tag = 'scoped memory for tpu_custom_call.1']
    #allocation10 [shape = 'u8[65536]{0}', space=vmem, size = 0x10000, scoped, tag = 'input window, operand 2, single buffered']
    #allocation11 [shape = 'u8[65536]{0}', space=vmem, size = 0x10000, scoped, tag = 'input window, operand 3, single buffered']
    #allocation12 [shape = 's32[1]{0}', space=sflag, size = 0x4, scoped, tag = 'scoped memory for tpu_custom_call.1']
    #allocation13 [shape = 'u8[4096]{0}', space=vmem, size = 0x1000, scoped, tag = 'output window, operand 0, single buffered']
    #allocation14 [shape = 'u8[512]{0}', space=vmem, size = 0x400, scoped, tag = 'output window, operand 1, single buffered']
    #allocation15 [shape = 's32[1]{0}', space=sflag, size = 0x4, scoped, tag = 'scoped memory for tpu_custom_call.1']
    #allocation16 [shape = 'u8[512]{0}', space=vmem, size = 0x400, scoped, tag = 'output window, operand 2, single buffered']
    %15 = vsyncpa [#allocation6], 0
    %16 = vsyncpa [#allocation9], 0
    %17 = vsyncpa [#allocation12], 0
    %18 = vsyncpa [#allocation7], 0
    %19 = vsyncpa [#allocation15], 0
    // Predicated region
    $region2: #{tpu_custom_call.1} parent=1 // pred_check
      _
    $region3: #{tpu_custom_call.1} parent=1 // pred_check_branch
      %21 = sbr.rel (0) target = $region5
    $region4: #{tpu_custom_call.1} parent=1 // pred_region
      %s23 = ssub.s32 128, 128
      %24 = vsyncadd [#allocation6], %s23
      %s26 = sshll.u32 [#allocation5], 4
      %s27 = int_to_ptr.vmem [resolvable:$true] %s26
      %29 = dma.hbm_to_vmem [thread:$0]  %s0, 128, %s27, [#allocation6]
    $region5: #{tpu_custom_call.1} parent=1 // pred_fallthru
      _
    // Predicated region
    $region6: #{tpu_custom_call.1} parent=1 // pred_check
      _
    $region7: #{tpu_custom_call.1} parent=1 // pred_check_branch
      %31 = sbr.rel (0) target = $region9
    $region8: #{tpu_custom_call.1} parent=1 // pred_region
      %s33 = ssub.s32 2048, 2048
      %34 = vsyncadd [#allocation9], %s33
      %s35 = sshll.u32 [#allocation8], 4
      %s36 = int_to_ptr.vmem [resolvable:$true] %s35
      %41 = dma.hbm_to_vmem [thread:$0]  %s1, 2048, %s36, [#allocation9], 128, 128, 8
    $region9: #{tpu_custom_call.1} parent=1 // pred_fallthru
      _
    // Predicated region
    $region10: #{tpu_custom_call.1} parent=1 // pred_check
      _
    $region11: #{tpu_custom_call.1} parent=1 // pred_check_branch
      %43 = sbr.rel (0) target = $region13
    $region12: #{tpu_custom_call.1} parent=1 // pred_region
      %s45 = ssub.s32 2048, 2048
      %46 = vsyncadd [#allocation9], %s45
      %s47 = sshll.u32 [#allocation10], 4
      %s48 = int_to_ptr.vmem [resolvable:$true] %s47
      %53 = dma.hbm_to_vmem [thread:$0]  %s2, 2048, %s48, [#allocation9], 128, 128, 8
    $region13: #{tpu_custom_call.1} parent=1 // pred_fallthru
      _
    // Predicated region
    $region14: #{tpu_custom_call.1} parent=1 // pred_check
      _
    $region15: #{tpu_custom_call.1} parent=1 // pred_check_branch
      %55 = sbr.rel (0) target = $region17
    $region16: #{tpu_custom_call.1} parent=1 // pred_region
      %s57 = ssub.s32 2048, 2048
      %58 = vsyncadd [#allocation12], %s57
      %s59 = sshll.u32 [#allocation11], 4
      %s60 = int_to_ptr.vmem [resolvable:$true] %s59
      %65 = dma.hbm_to_vmem [thread:$0]  %s3, 2048, %s60, [#allocation12], 128, 128, 8
    $region17: #{tpu_custom_call.1} parent=1 // pred_fallthru
      _
    // Predicated region
    $region18: #{tpu_custom_call.1} parent=1 // pred_check
      _
    $region19: #{tpu_custom_call.1} parent=1 // pred_check_branch
      %67 = sbr.rel (0) target = $region21
    $region20: #{tpu_custom_call.1} parent=1 // pred_region
      _
    $region21: #{tpu_custom_call.1} parent=1 // pred_fallthru
      _
    // Predicated region
    $region22: #{tpu_custom_call.1} parent=1 // pred_check
      _
    $region23: #{tpu_custom_call.1} parent=1 // pred_check_branch
      %69 = sbr.rel (0) target = $region25
    $region24: #{tpu_custom_call.1} parent=1 // pred_region
      _
    $region25: #{tpu_custom_call.1} parent=1 // pred_fallthru
      _
    // Predicated region
    $region26: #{tpu_custom_call.1} parent=1 // pred_check
      _
    $region27: #{tpu_custom_call.1} parent=1 // pred_check_branch
      %71 = sbr.rel (0) target = $region29
    $region28: #{tpu_custom_call.1} parent=1 // pred_region
      _
    $region29: #{tpu_custom_call.1} parent=1 // pred_fallthru
      _
    // Predicated region
    $region30: #{tpu_custom_call.1} parent=1 // pred_check
      _
    $region31: #{tpu_custom_call.1} parent=1 // pred_check_branch
      %73 = sbr.rel (0) target = $region33
    $region32: #{tpu_custom_call.1} parent=1 // pred_region
      %74 = dma.done [#allocation6], 128
    $region33: #{tpu_custom_call.1} parent=1 // pred_fallthru
      _
    // Predicated region
    $region34: #{tpu_custom_call.1} parent=1 // pred_check
      _
    $region35: #{tpu_custom_call.1} parent=1 // pred_check_branch
      %76 = sbr.rel (0) target = $region37
    $region36: #{tpu_custom_call.1} parent=1 // pred_region
      %77 = dma.done [#allocation9], 2048
    $region37: #{tpu_custom_call.1} parent=1 // pred_fallthru
      _
    // Predicated region
    $region38: #{tpu_custom_call.1} parent=1 // pred_check
      _
    $region39: #{tpu_custom_call.1} parent=1 // pred_check_branch
      %79 = sbr.rel (0) target = $region41
    $region40: #{tpu_custom_call.1} parent=1 // pred_region
      %80 = dma.done [#allocation9], 2048
    $region41: #{tpu_custom_call.1} parent=1 // pred_fallthru
      _
    // Predicated region
    $region42: #{tpu_custom_call.1} parent=1 // pred_check
      _
    $region43: #{tpu_custom_call.1} parent=1 // pred_check_branch
      %82 = sbr.rel (0) target = $region45
    $region44: #{tpu_custom_call.1} parent=1 // pred_region
      %83 = dma.done [#allocation12], 2048
    $region45: #{tpu_custom_call.1} parent=1 // pred_fallthru
      _
    %p84 = scmp.eq.s32.totalorder 0, 0
    %p85 = scmp.eq.s32.totalorder 0, 0
    %p86 = pnand %p84, %p85
    %p87 = pneg %p86
    // Predicated region
    $region46: #{tpu_custom_call.1} parent=1 // pred_check
      _
    $region47: #{tpu_custom_call.1} parent=1 // pred_check_branch
      %89 = sbr.rel (%p86) target = $region49
    $region48: #{tpu_custom_call.1} parent=1 // pred_region
      %vm90 = vcmask 0
      %91 = vst.msk [vmem:[#allocation3] sm:$0x1] %vm90, 0.0
      %92 = vst.msk [vmem:[#allocation4] sm:$0x1] %vm90, 0.0
    $region49: #{tpu_custom_call.1} parent=1 // pred_fallthru
      _
    // Predicated region
    $region50: #{tpu_custom_call.1} parent=1 // pred_check
      %p93 = pneg %p85
    $region51: #{tpu_custom_call.1} parent=1 // pred_check_branch
      %95 = sbr.rel (%p93) target = $region53
    $region52: #{tpu_custom_call.1} parent=1 // pred_region
      %96 = vst [vmem:[#allocation2] sm:$0xff] 0.0
    $region53: #{tpu_custom_call.1} parent=1 // pred_fallthru
      _
    %v97 = vld [vmem:[#allocation8] sm:$0xff]
    %v98 = vld [vmem:[#allocation8 + $0x8] sm:$0xff]
    %v99 = vld [vmem:[#allocation8 + $0x10] sm:$0xff]
    %v100 = vld [vmem:[#allocation8 + $0x18] sm:$0xff]
    %v101 = vld [vmem:[#allocation8 + $0x20] sm:$0xff]
    %v102 = vld [vmem:[#allocation8 + $0x28] sm:$0xff]
    %v103 = vld [vmem:[#allocation8 + $0x30] sm:$0xff]
    %v104 = vld [vmem:[#allocation8 + $0x38] sm:$0xff]
    %v105 = vld [vmem:[#allocation8 + $0x40] sm:$0xff]
    %v106 = vld [vmem:[#allocation8 + $0x48] sm:$0xff]
    %v107 = vld [vmem:[#allocation8 + $0x50] sm:$0xff]
    %v108 = vld [vmem:[#allocation8 + $0x58] sm:$0xff]
    %v109 = vld [vmem:[#allocation8 + $0x60] sm:$0xff]
    %v110 = vld [vmem:[#allocation8 + $0x68] sm:$0xff]
    %v111 = vld [vmem:[#allocation8 + $0x70] sm:$0xff]
    %v112 = vld [vmem:[#allocation8 + $0x78] sm:$0xff]
    %v113 = vld [vmem:[#allocation10] sm:$0xff]
    %v114 = vld [vmem:[#allocation10 + $0x8] sm:$0xff]
    %v115 = vld [vmem:[#allocation10 + $0x10] sm:$0xff]
    %v116 = vld [vmem:[#allocation10 + $0x18] sm:$0xff]
    %v117 = vld [vmem:[#allocation10 + $0x20] sm:$0xff]
    %v118 = vld [vmem:[#allocation10 + $0x28] sm:$0xff]
    %v119 = vld [vmem:[#allocation10 + $0x30] sm:$0xff]
    %v120 = vld [vmem:[#allocation10 + $0x38] sm:$0xff]
    %v121 = vld [vmem:[#allocation10 + $0x40] sm:$0xff]
    %v122 = vld [vmem:[#allocation10 + $0x48] sm:$0xff]
    %v123 = vld [vmem:[#allocation10 + $0x50] sm:$0xff]
    %v124 = vld [vmem:[#allocation10 + $0x58] sm:$0xff]
    %v125 = vld [vmem:[#allocation10 + $0x60] sm:$0xff]
    %v126 = vld [vmem:[#allocation10 + $0x68] sm:$0xff]
    %v127 = vld [vmem:[#allocation10 + $0x70] sm:$0xff]
    %v128 = vld [vmem:[#allocation10 + $0x78] sm:$0xff]
    %v129 = vld [vmem:[#allocation11] sm:$0xff]
    %v130 = vld [vmem:[#allocation11 + $0x8] sm:$0xff]
    %v131 = vld [vmem:[#allocation11 + $0x10] sm:$0xff]
    %v132 = vld [vmem:[#allocation11 + $0x18] sm:$0xff]
    %v133 = vld [vmem:[#allocation11 + $0x20] sm:$0xff]
    %v134 = vld [vmem:[#allocation11 + $0x28] sm:$0xff]
    %v135 = vld [vmem:[#allocation11 + $0x30] sm:$0xff]
    %v136 = vld [vmem:[#allocation11 + $0x38] sm:$0xff]
    %v137 = vld [vmem:[#allocation11 + $0x40] sm:$0xff]
    %v138 = vld [vmem:[#allocation11 + $0x48] sm:$0xff]
    %v139 = vld [vmem:[#allocation11 + $0x50] sm:$0xff]
    %v140 = vld [vmem:[#allocation11 + $0x58] sm:$0xff]
    %v141 = vld [vmem:[#allocation11 + $0x60] sm:$0xff]
    %v142 = vld [vmem:[#allocation11 + $0x68] sm:$0xff]
    %v143 = vld [vmem:[#allocation11 + $0x70] sm:$0xff]
    %v144 = vld [vmem:[#allocation11 + $0x78] sm:$0xff]
    %v145 = vmul.f32 %v113, 1.442695
    %v146 = vpow.pop %v145
    %v147 = vmul.f32 %v114, 1.442695
    %v148 = vpow.pop %v147
    %v149 = vmul.f32 %v115, 1.442695
    %v150 = vpow.pop %v149
    %v151 = vmul.f32 %v116, 1.442695
    %v152 = vpow.pop %v151
    %v153 = vmul.f32 %v117, 1.442695
    %v154 = vpow.pop %v153
    %v155 = vmul.f32 %v118, 1.442695
    %v156 = vpow.pop %v155
    %v157 = vmul.f32 %v119, 1.442695
    %v158 = vpow.pop %v157
    %v159 = vmul.f32 %v120, 1.442695
    %v160 = vpow.pop %v159
    %v161 = vmul.f32 %v121, 1.442695
    %v162 = vpow.pop %v161
    %v163 = vmul.f32 %v122, 1.442695
    %v164 = vpow.pop %v163
    %v165 = vmul.f32 %v123, 1.442695
    %v166 = vpow.pop %v165
    %v167 = vmul.f32 %v124, 1.442695
    %v168 = vpow.pop %v167
    %v169 = vmul.f32 %v125, 1.442695
    %v170 = vpow.pop %v169
    %v171 = vmul.f32 %v126, 1.442695
    %v172 = vpow.pop %v171
    %v173 = vmul.f32 %v127, 1.442695
    %v174 = vpow.pop %v173
    %v175 = vmul.f32 %v128, 1.442695
    %v176 = vpow.pop %v175
    %v177 = vadd.f32 %v146, 1.0
    %v178 = vlog2.pop %v177
    %v179 = vmul.f32 %v178, 0.6931472
    %v180 = vmul.f32 -0.5, %v146
    %v181 = vadd.f32 %v180, 1.0
    %v182 = vmul.f32 %v181, %v146
    %v183 = vand.u32 2147483647, %v146
    %vm184 = vcmp.lt.f32.partialorder %v183, 0.0004427343
    %v185 = vsel %vm184, %v182, %v179
    %v186 = vadd.f32 %v148, 1.0
    %v187 = vlog2.pop %v186
    %v188 = vmul.f32 %v187, 0.6931472
    %v189 = vmul.f32 -0.5, %v148
    %v190 = vadd.f32 %v189, 1.0
    %v191 = vmul.f32 %v190, %v148
    %v192 = vand.u32 2147483647, %v148
    %vm193 = vcmp.lt.f32.partialorder %v192, 0.0004427343
    %v194 = vsel %vm193, %v191, %v188
    %v195 = vadd.f32 %v150, 1.0
    %v196 = vlog2.pop %v195
    %v197 = vmul.f32 %v196, 0.6931472
    %v198 = vmul.f32 -0.5, %v150
    %v199 = vadd.f32 %v198, 1.0
    %v200 = vmul.f32 %v199, %v150
    %v201 = vand.u32 2147483647, %v150
    %vm202 = vcmp.lt.f32.partialorder %v201, 0.0004427343
    %v203 = vsel %vm202, %v200, %v197
    %v204 = vadd.f32 %v152, 1.0
    %v205 = vlog2.pop %v204
    %v206 = vmul.f32 %v205, 0.6931472
    %v207 = vmul.f32 -0.5, %v152
    %v208 = vadd.f32 %v207, 1.0
    %v209 = vmul.f32 %v208, %v152
    %v210 = vand.u32 2147483647, %v152
    %vm211 = vcmp.lt.f32.partialorder %v210, 0.0004427343
    %v212 = vsel %vm211, %v209, %v206
    %v213 = vadd.f32 %v154, 1.0
    %v214 = vlog2.pop %v213
    %v215 = vmul.f32 %v214, 0.6931472
    %v216 = vmul.f32 -0.5, %v154
    %v217 = vadd.f32 %v216, 1.0
    %v218 = vmul.f32 %v217, %v154
    %v219 = vand.u32 2147483647, %v154
    %vm220 = vcmp.lt.f32.partialorder %v219, 0.0004427343
    %v221 = vsel %vm220, %v218, %v215
    %v222 = vadd.f32 %v156, 1.0
    %v223 = vlog2.pop %v222
    %v224 = vmul.f32 %v223, 0.6931472
    %v225 = vmul.f32 -0.5, %v156
    %v226 = vadd.f32 %v225, 1.0
    %v227 = vmul.f32 %v226, %v156
    %v228 = vand.u32 2147483647, %v156
    %vm229 = vcmp.lt.f32.partialorder %v228, 0.0004427343
    %v230 = vsel %vm229, %v227, %v224
    %v231 = vadd.f32 %v158, 1.0
    %v232 = vlog2.pop %v231
    %v233 = vmul.f32 %v232, 0.6931472
    %v234 = vmul.f32 -0.5, %v158
    %v235 = vadd.f32 %v234, 1.0
    %v236 = vmul.f32 %v235, %v158
    %v237 = vand.u32 2147483647, %v158
    %vm238 = vcmp.lt.f32.partialorder %v237, 0.0004427343
    %v239 = vsel %vm238, %v236, %v233
    %v240 = vadd.f32 %v160, 1.0
    %v241 = vlog2.pop %v240
    %v242 = vmul.f32 %v241, 0.6931472
    %v243 = vmul.f32 -0.5, %v160
    %v244 = vadd.f32 %v243, 1.0
    %v245 = vmul.f32 %v244, %v160
    %v246 = vand.u32 2147483647, %v160
    %vm247 = vcmp.lt.f32.partialorder %v246, 0.0004427343
    %v248 = vsel %vm247, %v245, %v242
    %v249 = vadd.f32 %v162, 1.0
    %v250 = vlog2.pop %v249
    %v251 = vmul.f32 %v250, 0.6931472
    %v252 = vmul.f32 -0.5, %v162
    %v253 = vadd.f32 %v252, 1.0
    %v254 = vmul.f32 %v253, %v162
    %v255 = vand.u32 2147483647, %v162
    %vm256 = vcmp.lt.f32.partialorder %v255, 0.0004427343
    %v257 = vsel %vm256, %v254, %v251
    %v258 = vadd.f32 %v164, 1.0
    %v259 = vlog2.pop %v258
    %v260 = vmul.f32 %v259, 0.6931472
    %v261 = vmul.f32 -0.5, %v164
    %v262 = vadd.f32 %v261, 1.0
    %v263 = vmul.f32 %v262, %v164
    %v264 = vand.u32 2147483647, %v164
    %vm265 = vcmp.lt.f32.partialorder %v264, 0.0004427343
    %v266 = vsel %vm265, %v263, %v260
    %v267 = vadd.f32 %v166, 1.0
    %v268 = vlog2.pop %v267
    %v269 = vmul.f32 %v268, 0.6931472
    %v270 = vmul.f32 -0.5, %v166
    %v271 = vadd.f32 %v270, 1.0
    %v272 = vmul.f32 %v271, %v166
    %v273 = vand.u32 2147483647, %v166
    %vm274 = vcmp.lt.f32.partialorder %v273, 0.0004427343
    %v275 = vsel %vm274, %v272, %v269
    %v276 = vadd.f32 %v168, 1.0
    %v277 = vlog2.pop %v276
    %v278 = vmul.f32 %v277, 0.6931472
    %v279 = vmul.f32 -0.5, %v168
    %v280 = vadd.f32 %v279, 1.0
    %v281 = vmul.f32 %v280, %v168
    %v282 = vand.u32 2147483647, %v168
    %vm283 = vcmp.lt.f32.partialorder %v282, 0.0004427343
    %v284 = vsel %vm283, %v281, %v278
    %v285 = vadd.f32 %v170, 1.0
    %v286 = vlog2.pop %v285
    %v287 = vmul.f32 %v286, 0.6931472
    %v288 = vmul.f32 -0.5, %v170
    %v289 = vadd.f32 %v288, 1.0
    %v290 = vmul.f32 %v289, %v170
    %v291 = vand.u32 2147483647, %v170
    %vm292 = vcmp.lt.f32.partialorder %v291, 0.0004427343
    %v293 = vsel %vm292, %v290, %v287
    %v294 = vadd.f32 %v172, 1.0
    %v295 = vlog2.pop %v294
    %v296 = vmul.f32 %v295, 0.6931472
    %v297 = vmul.f32 -0.5, %v172
    %v298 = vadd.f32 %v297, 1.0
    %v299 = vmul.f32 %v298, %v172
    %v300 = vand.u32 2147483647, %v172
    %vm301 = vcmp.lt.f32.partialorder %v300, 0.0004427343
    %v302 = vsel %vm301, %v299, %v296
    %v303 = vadd.f32 %v174, 1.0
    %v304 = vlog2.pop %v303
    %v305 = vmul.f32 %v304, 0.6931472
    %v306 = vmul.f32 -0.5, %v174
    %v307 = vadd.f32 %v306, 1.0
    %v308 = vmul.f32 %v307, %v174
    %v309 = vand.u32 2147483647, %v174
    %vm310 = vcmp.lt.f32.partialorder %v309, 0.0004427343
    %v311 = vsel %vm310, %v308, %v305
    %v312 = vadd.f32 %v176, 1.0
    %v313 = vlog2.pop %v312
    %v314 = vmul.f32 %v313, 0.6931472
    %v315 = vmul.f32 -0.5, %v176
    %v316 = vadd.f32 %v315, 1.0
    %v317 = vmul.f32 %v316, %v176
    %v318 = vand.u32 2147483647, %v176
    %vm319 = vcmp.lt.f32.partialorder %v318, 0.0004427343
    %v320 = vsel %vm319, %v317, %v314
    %v321 = vmul.f32 %v185, %v129
    %v322 = vmul.f32 %v194, %v130
    %v323 = vmul.f32 %v203, %v131
    %v324 = vmul.f32 %v212, %v132
    %v325 = vmul.f32 %v221, %v133
    %v326 = vmul.f32 %v230, %v134
    %v327 = vmul.f32 %v239, %v135
    %v328 = vmul.f32 %v248, %v136
    %v329 = vmul.f32 %v257, %v137
    %v330 = vmul.f32 %v266, %v138
    %v331 = vmul.f32 %v275, %v139
    %v332 = vmul.f32 %v284, %v140
    %v333 = vmul.f32 %v293, %v141
    %v334 = vmul.f32 %v302, %v142
    %v335 = vmul.f32 %v311, %v143
    %v336 = vmul.f32 %v320, %v144
    %v337 = vadd.f32 %v97, %v321
    %v338 = vadd.f32 %v98, %v322
    %v339 = vadd.f32 %v99, %v323
    %v340 = vadd.f32 %v100, %v324
    %v341 = vadd.f32 %v101, %v325
    %v342 = vadd.f32 %v102, %v326
    %v343 = vadd.f32 %v103, %v327
    %v344 = vadd.f32 %v104, %v328
    %v345 = vadd.f32 %v105, %v329
    %v346 = vadd.f32 %v106, %v330
    %v347 = vadd.f32 %v107, %v331
    %v348 = vadd.f32 %v108, %v332
    %v349 = vadd.f32 %v109, %v333
    %v350 = vadd.f32 %v110, %v334
    %v351 = vadd.f32 %v111, %v335
    %v352 = vadd.f32 %v112, %v336
    %v353 = vld [vmem:[#allocation2] sm:$0xff]
    %v354 = vld [vmem:[#allocation5] sm:$0xff]
    %355 = vmatprep.subr.mxu0 0.0
    %356 = vmatpush1.msra.mxu0 %v337
    %357 = vmatprep.subr.mxu0 0.0
    %358 = vmatpush1.msra.mxu0 %v338
    %359 = vmatprep.subr.mxu0 0.0
    %360 = vmatpush1.msra.mxu0 %v339
    %361 = vmatprep.subr.mxu0 0.0
    %362 = vmatpush1.msra.mxu0 %v340
    %363 = vmatprep.subr.mxu0 0.0
    %364 = vmatpush1.msra.mxu0 %v341
    %365 = vmatprep.subr.mxu0 0.0
    %366 = vmatpush1.msra.mxu0 %v342
    %367 = vmatprep.subr.mxu0 0.0
    %368 = vmatpush1.msra.mxu0 %v343
    %369 = vmatprep.subr.mxu0 0.0
    %370 = vmatpush1.msra.mxu0 %v344
    %371 = vmatprep.subr.mxu0 0.0
    %372 = vmatpush1.msra.mxu0 %v345
    %373 = vmatprep.subr.mxu0 0.0
    %374 = vmatpush1.msra.mxu0 %v346
    %375 = vmatprep.subr.mxu0 0.0
    %376 = vmatpush1.msra.mxu0 %v347
    %377 = vmatprep.subr.mxu0 0.0
    %378 = vmatpush1.msra.mxu0 %v348
    %379 = vmatprep.subr.mxu0 0.0
    %380 = vmatpush1.msra.mxu0 %v349
    %381 = vmatprep.subr.mxu0 0.0
    %382 = vmatpush1.msra.mxu0 %v350
    %383 = vmatprep.subr.mxu0 0.0
    %384 = vmatpush1.msra.mxu0 %v351
    %385 = vmatprep.subr.mxu0 0.0
    %386 = vmatpush1.msra.mxu0 %v352
    %387 = vmatprep.subr.mxu0 0.0
    %388 = vmatpush1.msra.mxu0 0.0
    %389 = vmatprep.subr.mxu0 0.0
    %390 = vmatpush1.msra.mxu0 0.0
    %391 = vmatprep.subr.mxu0 0.0
    %392 = vmatpush1.msra.mxu0 0.0
    %393 = vmatprep.subr.mxu0 0.0
    %394 = vmatpush1.msra.mxu0 0.0
    %395 = vmatprep.subr.mxu0 0.0
    %396 = vmatpush1.msra.mxu0 0.0
    %397 = vmatprep.subr.mxu0 0.0
    %398 = vmatpush1.msra.mxu0 0.0
    %399 = vmatprep.subr.mxu0 0.0
    %400 = vmatpush1.msra.mxu0 0.0
    %401 = vmatprep.subr.mxu0 0.0
    %402 = vmatpush1.msra.mxu0 0.0
    %403 = vmatprep.subr.mxu0 0.0
    %404 = vmatpush1.msra.mxu0 0.0
    %405 = vmatprep.subr.mxu0 0.0
    %406 = vmatpush1.msra.mxu0 0.0
    %407 = vmatprep.subr.mxu0 0.0
    %408 = vmatpush1.msra.mxu0 0.0
    %409 = vmatprep.subr.mxu0 0.0
    %410 = vmatpush1.msra.mxu0 0.0
    %411 = vmatprep.subr.mxu0 0.0
    %412 = vmatpush1.msra.mxu0 0.0
    %413 = vmatprep.subr.mxu0 0.0
    %414 = vmatpush1.msra.mxu0 0.0
    %415 = vmatprep.subr.mxu0 0.0
    %416 = vmatpush1.msra.mxu0 0.0
    %417 = vmatprep.subr.mxu0 0.0
    %418 = vmatpush1.msra.mxu0 0.0
    %419 = vmatprep.mubr.f32.mxu0 0.0
    %420 = vmatmul.mubr.f32.gmra.mrb[0].mxu0 %v354
    %v421 = vpop.f32.mrb[0].mxu0
    %v422 = vadd.f32 0.0, %v421
    %v423 = vpop.f32.mrb[0].mxu0
    %424 = vdwg.mxu0
    %v425 = vadd.f32 %v353, %v422
    %426 = vst [vmem:[#allocation2] sm:$0xff] %v425
    %v427 = vsub.f32 -0.9189385, %v113
    %v428 = vsub.f32 -0.9189385, %v114
    %v429 = vsub.f32 -0.9189385, %v115
    %v430 = vsub.f32 -0.9189385, %v116
    %v431 = vsub.f32 -0.9189385, %v117
    %v432 = vsub.f32 -0.9189385, %v118
    %v433 = vsub.f32 -0.9189385, %v119
    %v434 = vsub.f32 -0.9189385, %v120
    %v435 = vsub.f32 -0.9189385, %v121
    %v436 = vsub.f32 -0.9189385, %v122
    %v437 = vsub.f32 -0.9189385, %v123
    %v438 = vsub.f32 -0.9189385, %v124
    %v439 = vsub.f32 -0.9189385, %v125
    %v440 = vsub.f32 -0.9189385, %v126
    %v441 = vsub.f32 -0.9189385, %v127
    %v442 = vsub.f32 -0.9189385, %v128
    %v443 = vmul.f32 %v321, %v321
    %v444 = vmul.f32 %v322, %v322
    %v445 = vmul.f32 %v323, %v323
    %v446 = vmul.f32 %v324, %v324
    %v447 = vmul.f32 %v325, %v325
    %v448 = vmul.f32 %v326, %v326
    %v449 = vmul.f32 %v327, %v327
    %v450 = vmul.f32 %v328, %v328
    %v451 = vmul.f32 %v329, %v329
    %v452 = vmul.f32 %v330, %v330
    %v453 = vmul.f32 %v331, %v331
    %v454 = vmul.f32 %v332, %v332
    %v455 = vmul.f32 %v333, %v333
    %v456 = vmul.f32 %v334, %v334
    %v457 = vmul.f32 %v335, %v335
    %v458 = vmul.f32 %v336, %v336
    %v459 = vmul.f32 %v146, 2.0
    %v460 = vmul.f32 %v148, 2.0
    %v461 = vmul.f32 %v150, 2.0
    %v462 = vmul.f32 %v152, 2.0
    %v463 = vmul.f32 %v154, 2.0
    %v464 = vmul.f32 %v156, 2.0
    %v465 = vmul.f32 %v158, 2.0
    %v466 = vmul.f32 %v160, 2.0
    %v467 = vmul.f32 %v162, 2.0
    %v468 = vmul.f32 %v164, 2.0
    %v469 = vmul.f32 %v166, 2.0
    %v470 = vmul.f32 %v168, 2.0
    %v471 = vmul.f32 %v170, 2.0
    %v472 = vmul.f32 %v172, 2.0
    %v473 = vmul.f32 %v174, 2.0
    %v474 = vmul.f32 %v176, 2.0
    %v475 = vmul.f32 %v459, %v146
    %v476 = vmul.f32 %v460, %v148
    %v477 = vmul.f32 %v461, %v150
    %v478 = vmul.f32 %v462, %v152
    %v479 = vmul.f32 %v463, %v154
    %v480 = vmul.f32 %v464, %v156
    %v481 = vmul.f32 %v465, %v158
    %v482 = vmul.f32 %v466, %v160
    %v483 = vmul.f32 %v467, %v162
    %v484 = vmul.f32 %v468, %v164
    %v485 = vmul.f32 %v469, %v166
    %v486 = vmul.f32 %v470, %v168
    %v487 = vmul.f32 %v471, %v170
    %v488 = vmul.f32 %v472, %v172
    %v489 = vmul.f32 %v473, %v174
    %v490 = vmul.f32 %v474, %v176
    %v491 = vrcp.pop %v475
    %v492 = vmul.f32 %v443, %v491
    %v493 = vrcp.pop %v476
    %v494 = vmul.f32 %v444, %v493
    %v495 = vrcp.pop %v477
    %v496 = vmul.f32 %v445, %v495
    %v497 = vrcp.pop %v478
    %v498 = vmul.f32 %v446, %v497
    %v499 = vrcp.pop %v479
    %v500 = vmul.f32 %v447, %v499
    %v501 = vrcp.pop %v480
    %v502 = vmul.f32 %v448, %v501
    %v503 = vrcp.pop %v481
    %v504 = vmul.f32 %v449, %v503
    %v505 = vrcp.pop %v482
    %v506 = vmul.f32 %v450, %v505
    %v507 = vrcp.pop %v483
    %v508 = vmul.f32 %v451, %v507
    %v509 = vrcp.pop %v484
    %v510 = vmul.f32 %v452, %v509
    %v511 = vrcp.pop %v485
    %v512 = vmul.f32 %v453, %v511
    %v513 = vrcp.pop %v486
    %v514 = vmul.f32 %v454, %v513
    %v515 = vrcp.pop %v487
    %v516 = vmul.f32 %v455, %v515
    %v517 = vrcp.pop %v488
    %v518 = vmul.f32 %v456, %v517
    %v519 = vrcp.pop %v489
    %v520 = vmul.f32 %v457, %v519
    %v521 = vrcp.pop %v490
    %v522 = vmul.f32 %v458, %v521
    %v523 = vsub.f32 %v427, %v492
    %v524 = vsub.f32 %v428, %v494
    %v525 = vsub.f32 %v429, %v496
    %v526 = vsub.f32 %v430, %v498
    %v527 = vsub.f32 %v431, %v500
    %v528 = vsub.f32 %v432, %v502
    %v529 = vsub.f32 %v433, %v504
    %v530 = vsub.f32 %v434, %v506
    %v531 = vsub.f32 %v435, %v508
    %v532 = vsub.f32 %v436, %v510
    %v533 = vsub.f32 %v437, %v512
    %v534 = vsub.f32 %v438, %v514
    %v535 = vsub.f32 %v439, %v516
    %v536 = vsub.f32 %v440, %v518
    %v537 = vsub.f32 %v441, %v520
    %v538 = vsub.f32 %v442, %v522
    %v539 = vmul.f32 %v337, %v337
    %v540 = vmul.f32 %v338, %v338
    %v541 = vmul.f32 %v339, %v339
    %v542 = vmul.f32 %v340, %v340
    %v543 = vmul.f32 %v341, %v341
    %v544 = vmul.f32 %v342, %v342
    %v545 = vmul.f32 %v343, %v343
    %v546 = vmul.f32 %v344, %v344
    %v547 = vmul.f32 %v345, %v345
    %v548 = vmul.f32 %v346, %v346
    %v549 = vmul.f32 %v347, %v347
    %v550 = vmul.f32 %v348, %v348
    %v551 = vmul.f32 %v349, %v349
    %v552 = vmul.f32 %v350, %v350
    %v553 = vmul.f32 %v351, %v351
    %v554 = vmul.f32 %v352, %v352
    %v555 = vmul.f32 %v539, 50.0
    %v556 = vmul.f32 %v540, 50.0
    %v557 = vmul.f32 %v541, 50.0
    %v558 = vmul.f32 %v542, 50.0
    %v559 = vmul.f32 %v543, 50.0
    %v560 = vmul.f32 %v544, 50.0
    %v561 = vmul.f32 %v545, 50.0
    %v562 = vmul.f32 %v546, 50.0
    %v563 = vmul.f32 %v547, 50.0
    %v564 = vmul.f32 %v548, 50.0
    %v565 = vmul.f32 %v549, 50.0
    %v566 = vmul.f32 %v550, 50.0
    %v567 = vmul.f32 %v551, 50.0
    %v568 = vmul.f32 %v552, 50.0
    %v569 = vmul.f32 %v553, 50.0
    %v570 = vmul.f32 %v554, 50.0
    %v571 = vsub.f32 0.69049937, %v555
    %v572 = vsub.f32 0.69049937, %v556
    %v573 = vsub.f32 0.69049937, %v557
    %v574 = vsub.f32 0.69049937, %v558
    %v575 = vsub.f32 0.69049937, %v559
    %v576 = vsub.f32 0.69049937, %v560
    %v577 = vsub.f32 0.69049937, %v561
    %v578 = vsub.f32 0.69049937, %v562
    %v579 = vsub.f32 0.69049937, %v563
    %v580 = vsub.f32 0.69049937, %v564
    %v581 = vsub.f32 0.69049937, %v565
    %v582 = vsub.f32 0.69049937, %v566
    %v583 = vsub.f32 0.69049937, %v567
    %v584 = vsub.f32 0.69049937, %v568
    %v585 = vsub.f32 0.69049937, %v569
    %v586 = vsub.f32 0.69049937, %v570
    %v587 = vmul.f32 %v539, 0.5
    %v588 = vmul.f32 %v540, 0.5
    %v589 = vmul.f32 %v541, 0.5
    %v590 = vmul.f32 %v542, 0.5
    %v591 = vmul.f32 %v543, 0.5
    %v592 = vmul.f32 %v544, 0.5
    %v593 = vmul.f32 %v545, 0.5
    %v594 = vmul.f32 %v546, 0.5
    %v595 = vmul.f32 %v547, 0.5
    %v596 = vmul.f32 %v548, 0.5
    %v597 = vmul.f32 %v549, 0.5
    %v598 = vmul.f32 %v550, 0.5
    %v599 = vmul.f32 %v551, 0.5
    %v600 = vmul.f32 %v552, 0.5
    %v601 = vmul.f32 %v553, 0.5
    %v602 = vmul.f32 %v554, 0.5
    %v603 = vsub.f32 -1.6120857, %v587
    %v604 = vsub.f32 -1.6120857, %v588
    %v605 = vsub.f32 -1.6120857, %v589
    %v606 = vsub.f32 -1.6120857, %v590
    %v607 = vsub.f32 -1.6120857, %v591
    %v608 = vsub.f32 -1.6120857, %v592
    %v609 = vsub.f32 -1.6120857, %v593
    %v610 = vsub.f32 -1.6120857, %v594
    %v611 = vsub.f32 -1.6120857, %v595
    %v612 = vsub.f32 -1.6120857, %v596
    %v613 = vsub.f32 -1.6120857, %v597
    %v614 = vsub.f32 -1.6120857, %v598
    %v615 = vsub.f32 -1.6120857, %v599
    %v616 = vsub.f32 -1.6120857, %v600
    %v617 = vsub.f32 -1.6120857, %v601
    %v618 = vsub.f32 -1.6120857, %v602
    %v619 = vmax.f32 %v571, %v603
    %v620 = vmax.f32 %v572, %v604
    %v621 = vmax.f32 %v573, %v605
    %v622 = vmax.f32 %v574, %v606
    %v623 = vmax.f32 %v575, %v607
    %v624 = vmax.f32 %v576, %v608
    %v625 = vmax.f32 %v577, %v609
    %v626 = vmax.f32 %v578, %v610
    %v627 = vmax.f32 %v579, %v611
    %v628 = vmax.f32 %v580, %v612
    %v629 = vmax.f32 %v581, %v613
    %v630 = vmax.f32 %v582, %v614
    %v631 = vmax.f32 %v583, %v615
    %v632 = vmax.f32 %v584, %v616
    %v633 = vmax.f32 %v585, %v617
    %v634 = vmax.f32 %v586, %v618
    %v635 = vsub.f32 %v571, %v603
    %v636 = vsub.f32 %v572, %v604
    %v637 = vsub.f32 %v573, %v605
    %v638 = vsub.f32 %v574, %v606
    %v639 = vsub.f32 %v575, %v607
    %v640 = vsub.f32 %v576, %v608
    %v641 = vsub.f32 %v577, %v609
    %v642 = vsub.f32 %v578, %v610
    %v643 = vsub.f32 %v579, %v611
    %v644 = vsub.f32 %v580, %v612
    %v645 = vsub.f32 %v581, %v613
    %v646 = vsub.f32 %v582, %v614
    %v647 = vsub.f32 %v583, %v615
    %v648 = vsub.f32 %v584, %v616
    %v649 = vsub.f32 %v585, %v617
    %v650 = vsub.f32 %v586, %v618
    %v651 = vand.u32 2147483647, %v635
    %v652 = vand.u32 2147483647, %v636
    %v653 = vand.u32 2147483647, %v637
    %v654 = vand.u32 2147483647, %v638
    %v655 = vand.u32 2147483647, %v639
    %v656 = vand.u32 2147483647, %v640
    %v657 = vand.u32 2147483647, %v641
    %v658 = vand.u32 2147483647, %v642
    %v659 = vand.u32 2147483647, %v643
    %v660 = vand.u32 2147483647, %v644
    %v661 = vand.u32 2147483647, %v645
    %v662 = vand.u32 2147483647, %v646
    %v663 = vand.u32 2147483647, %v647
    %v664 = vand.u32 2147483647, %v648
    %v665 = vand.u32 2147483647, %v649
    %v666 = vand.u32 2147483647, %v650
    %v667 = vsub.f32 0.0, %v651
    %v668 = vsub.f32 0.0, %v652
    %v669 = vsub.f32 0.0, %v653
    %v670 = vsub.f32 0.0, %v654
    %v671 = vsub.f32 0.0, %v655
    %v672 = vsub.f32 0.0, %v656
    %v673 = vsub.f32 0.0, %v657
    %v674 = vsub.f32 0.0, %v658
    %v675 = vsub.f32 0.0, %v659
    %v676 = vsub.f32 0.0, %v660
    %v677 = vsub.f32 0.0, %v661
    %v678 = vsub.f32 0.0, %v662
    %v679 = vsub.f32 0.0, %v663
    %v680 = vsub.f32 0.0, %v664
    %v681 = vsub.f32 0.0, %v665
    %v682 = vsub.f32 0.0, %v666
    %v683 = vmul.f32 %v667, 1.442695
    %v684 = vpow.pop %v683
    %v685 = vmul.f32 %v668, 1.442695
    %v686 = vpow.pop %v685
    %v687 = vmul.f32 %v669, 1.442695
    %v688 = vpow.pop %v687
    %v689 = vmul.f32 %v670, 1.442695
    %v690 = vpow.pop %v689
    %v691 = vmul.f32 %v671, 1.442695
    %v692 = vpow.pop %v691
    %v693 = vmul.f32 %v672, 1.442695
    %v694 = vpow.pop %v693
    %v695 = vmul.f32 %v673, 1.442695
    %v696 = vpow.pop %v695
    %v697 = vmul.f32 %v674, 1.442695
    %v698 = vpow.pop %v697
    %v699 = vmul.f32 %v675, 1.442695
    %v700 = vpow.pop %v699
    %v701 = vmul.f32 %v676, 1.442695
    %v702 = vpow.pop %v701
    %v703 = vmul.f32 %v677, 1.442695
    %v704 = vpow.pop %v703
    %v705 = vmul.f32 %v678, 1.442695
    %v706 = vpow.pop %v705
    %v707 = vmul.f32 %v679, 1.442695
    %v708 = vpow.pop %v707
    %v709 = vmul.f32 %v680, 1.442695
    %v710 = vpow.pop %v709
    %v711 = vmul.f32 %v681, 1.442695
    %v712 = vpow.pop %v711
    %v713 = vmul.f32 %v682, 1.442695
    %v714 = vpow.pop %v713
    %v715 = vadd.f32 %v684, 1.0
    %v716 = vlog2.pop %v715
    %v717 = vmul.f32 %v716, 0.6931472
    %v718 = vmul.f32 -0.5, %v684
    %v719 = vadd.f32 %v718, 1.0
    %v720 = vmul.f32 %v719, %v684
    %v721 = vand.u32 2147483647, %v684
    %vm722 = vcmp.lt.f32.partialorder %v721, 0.0004427343
    %v723 = vsel %vm722, %v720, %v717
    %v724 = vadd.f32 %v686, 1.0
    %v725 = vlog2.pop %v724
    %v726 = vmul.f32 %v725, 0.6931472
    %v727 = vmul.f32 -0.5, %v686
    %v728 = vadd.f32 %v727, 1.0
    %v729 = vmul.f32 %v728, %v686
    %v730 = vand.u32 2147483647, %v686
    %vm731 = vcmp.lt.f32.partialorder %v730, 0.0004427343
    %v732 = vsel %vm731, %v729, %v726
    %v733 = vadd.f32 %v688, 1.0
    %v734 = vlog2.pop %v733
    %v735 = vmul.f32 %v734, 0.6931472
    %v736 = vmul.f32 -0.5, %v688
    %v737 = vadd.f32 %v736, 1.0
    %v738 = vmul.f32 %v737, %v688
    %v739 = vand.u32 2147483647, %v688
    %vm740 = vcmp.lt.f32.partialorder %v739, 0.0004427343
    %v741 = vsel %vm740, %v738, %v735
    %v742 = vadd.f32 %v690, 1.0
    %v743 = vlog2.pop %v742
    %v744 = vmul.f32 %v743, 0.6931472
    %v745 = vmul.f32 -0.5, %v690
    %v746 = vadd.f32 %v745, 1.0
    %v747 = vmul.f32 %v746, %v690
    %v748 = vand.u32 2147483647, %v690
    %vm749 = vcmp.lt.f32.partialorder %v748, 0.0004427343
    %v750 = vsel %vm749, %v747, %v744
    %v751 = vadd.f32 %v692, 1.0
    %v752 = vlog2.pop %v751
    %v753 = vmul.f32 %v752, 0.6931472
    %v754 = vmul.f32 -0.5, %v692
    %v755 = vadd.f32 %v754, 1.0
    %v756 = vmul.f32 %v755, %v692
    %v757 = vand.u32 2147483647, %v692
    %vm758 = vcmp.lt.f32.partialorder %v757, 0.0004427343
    %v759 = vsel %vm758, %v756, %v753
    %v760 = vadd.f32 %v694, 1.0
    %v761 = vlog2.pop %v760
    %v762 = vmul.f32 %v761, 0.6931472
    %v763 = vmul.f32 -0.5, %v694
    %v764 = vadd.f32 %v763, 1.0
    %v765 = vmul.f32 %v764, %v694
    %v766 = vand.u32 2147483647, %v694
    %vm767 = vcmp.lt.f32.partialorder %v766, 0.0004427343
    %v768 = vsel %vm767, %v765, %v762
    %v769 = vadd.f32 %v696, 1.0
    %v770 = vlog2.pop %v769
    %v771 = vmul.f32 %v770, 0.6931472
    %v772 = vmul.f32 -0.5, %v696
    %v773 = vadd.f32 %v772, 1.0
    %v774 = vmul.f32 %v773, %v696
    %v775 = vand.u32 2147483647, %v696
    %vm776 = vcmp.lt.f32.partialorder %v775, 0.0004427343
    %v777 = vsel %vm776, %v774, %v771
    %v778 = vadd.f32 %v698, 1.0
    %v779 = vlog2.pop %v778
    %v780 = vmul.f32 %v779, 0.6931472
    %v781 = vmul.f32 -0.5, %v698
    %v782 = vadd.f32 %v781, 1.0
    %v783 = vmul.f32 %v782, %v698
    %v784 = vand.u32 2147483647, %v698
    %vm785 = vcmp.lt.f32.partialorder %v784, 0.0004427343
    %v786 = vsel %vm785, %v783, %v780
    %v787 = vadd.f32 %v700, 1.0
    %v788 = vlog2.pop %v787
    %v789 = vmul.f32 %v788, 0.6931472
    %v790 = vmul.f32 -0.5, %v700
    %v791 = vadd.f32 %v790, 1.0
    %v792 = vmul.f32 %v791, %v700
    %v793 = vand.u32 2147483647, %v700
    %vm794 = vcmp.lt.f32.partialorder %v793, 0.0004427343
    %v795 = vsel %vm794, %v792, %v789
    %v796 = vadd.f32 %v702, 1.0
    %v797 = vlog2.pop %v796
    %v798 = vmul.f32 %v797, 0.6931472
    %v799 = vmul.f32 -0.5, %v702
    %v800 = vadd.f32 %v799, 1.0
    %v801 = vmul.f32 %v800, %v702
    %v802 = vand.u32 2147483647, %v702
    %vm803 = vcmp.lt.f32.partialorder %v802, 0.0004427343
    %v804 = vsel %vm803, %v801, %v798
    %v805 = vadd.f32 %v704, 1.0
    %v806 = vlog2.pop %v805
    %v807 = vmul.f32 %v806, 0.6931472
    %v808 = vmul.f32 -0.5, %v704
    %v809 = vadd.f32 %v808, 1.0
    %v810 = vmul.f32 %v809, %v704
    %v811 = vand.u32 2147483647, %v704
    %vm812 = vcmp.lt.f32.partialorder %v811, 0.0004427343
    %v813 = vsel %vm812, %v810, %v807
    %v814 = vadd.f32 %v706, 1.0
    %v815 = vlog2.pop %v814
    %v816 = vmul.f32 %v815, 0.6931472
    %v817 = vmul.f32 -0.5, %v706
    %v818 = vadd.f32 %v817, 1.0
    %v819 = vmul.f32 %v818, %v706
    %v820 = vand.u32 2147483647, %v706
    %vm821 = vcmp.lt.f32.partialorder %v820, 0.0004427343
    %v822 = vsel %vm821, %v819, %v816
    %v823 = vadd.f32 %v708, 1.0
    %v824 = vlog2.pop %v823
    %v825 = vmul.f32 %v824, 0.6931472
    %v826 = vmul.f32 -0.5, %v708
    %v827 = vadd.f32 %v826, 1.0
    %v828 = vmul.f32 %v827, %v708
    %v829 = vand.u32 2147483647, %v708
    %vm830 = vcmp.lt.f32.partialorder %v829, 0.0004427343
    %v831 = vsel %vm830, %v828, %v825
    %v832 = vadd.f32 %v710, 1.0
    %v833 = vlog2.pop %v832
    %v834 = vmul.f32 %v833, 0.6931472
    %v835 = vmul.f32 -0.5, %v710
    %v836 = vadd.f32 %v835, 1.0
    %v837 = vmul.f32 %v836, %v710
    %v838 = vand.u32 2147483647, %v710
    %vm839 = vcmp.lt.f32.partialorder %v838, 0.0004427343
    %v840 = vsel %vm839, %v837, %v834
    %v841 = vadd.f32 %v712, 1.0
    %v842 = vlog2.pop %v841
    %v843 = vmul.f32 %v842, 0.6931472
    %v844 = vmul.f32 -0.5, %v712
    %v845 = vadd.f32 %v844, 1.0
    %v846 = vmul.f32 %v845, %v712
    %v847 = vand.u32 2147483647, %v712
    %vm848 = vcmp.lt.f32.partialorder %v847, 0.0004427343
    %v849 = vsel %vm848, %v846, %v843
    %v850 = vadd.f32 %v714, 1.0
    %v851 = vlog2.pop %v850
    %v852 = vmul.f32 %v851, 0.6931472
    %v853 = vmul.f32 -0.5, %v714
    %v854 = vadd.f32 %v853, 1.0
    %v855 = vmul.f32 %v854, %v714
    %v856 = vand.u32 2147483647, %v714
    %vm857 = vcmp.lt.f32.partialorder %v856, 0.0004427343
    %v858 = vsel %vm857, %v855, %v852
    %v859 = vadd.f32 %v619, %v723
    %v860 = vadd.f32 %v620, %v732
    %v861 = vadd.f32 %v621, %v741
    %v862 = vadd.f32 %v622, %v750
    %v863 = vadd.f32 %v623, %v759
    %v864 = vadd.f32 %v624, %v768
    %v865 = vadd.f32 %v625, %v777
    %v866 = vadd.f32 %v626, %v786
    %v867 = vadd.f32 %v627, %v795
    %v868 = vadd.f32 %v628, %v804
    %v869 = vadd.f32 %v629, %v813
    %v870 = vadd.f32 %v630, %v822
    %v871 = vadd.f32 %v631, %v831
    %v872 = vadd.f32 %v632, %v840
    %v873 = vadd.f32 %v633, %v849
    %v874 = vadd.f32 %v634, %v858
    %s875 = smul.u32 0, 128
    %v876 = vlaneseq
    %v877 = vshrl.u32 %v876, 7
    %v878 = vadd.s32 %v877, 8
    %v879 = vadd.s32 %v877, 16
    %v880 = vadd.s32 %v877, 24
    %v881 = vadd.s32 %v877, 32
    %v882 = vadd.s32 %v877, 40
    %v883 = vadd.s32 %v877, 48
    %v884 = vadd.s32 %v877, 56
    %v885 = vadd.s32 %v877, 64
    %v886 = vadd.s32 %v877, 72
    %v887 = vadd.s32 %v877, 80
    %v888 = vadd.s32 %v877, 88
    %v889 = vadd.s32 %v877, 96
    %v890 = vadd.s32 %v877, 104
    %v891 = vadd.s32 %v877, 112
    %v892 = vadd.s32 %v877, 120
    %v893 = vstv %s875
    %v894 = vadd.s32 %v893, %v877
    %v895 = vadd.s32 %v893, %v878
    %v896 = vadd.s32 %v893, %v879
    %v897 = vadd.s32 %v893, %v880
    %v898 = vadd.s32 %v893, %v881
    %v899 = vadd.s32 %v893, %v882
    %v900 = vadd.s32 %v893, %v883
    %v901 = vadd.s32 %v893, %v884
    %v902 = vadd.s32 %v893, %v885
    %v903 = vadd.s32 %v893, %v886
    %v904 = vadd.s32 %v893, %v887
    %v905 = vadd.s32 %v893, %v888
    %v906 = vadd.s32 %v893, %v889
    %v907 = vadd.s32 %v893, %v890
    %v908 = vadd.s32 %v893, %v891
    %v909 = vadd.s32 %v893, %v892
    %s910 = smul.u32 0, 128
    %v911 = vlaneseq
    %v912 = vand.u32 %v911, 127
    %v913 = vstv %s910
    %v914 = vadd.s32 %v913, %v912
    %vm915 = vcmp.lt.s32.totalorder %v894, 32
    %vm916 = vcmp.lt.s32.totalorder %v895, 32
    %vm917 = vcmp.lt.s32.totalorder %v896, 32
    %vm918 = vcmp.lt.s32.totalorder %v897, 32
    %vm919 = vcmp.lt.s32.totalorder %v898, 32
    %vm920 = vcmp.lt.s32.totalorder %v899, 32
    %vm921 = vcmp.lt.s32.totalorder %v900, 32
    %vm922 = vcmp.lt.s32.totalorder %v901, 32
    %vm923 = vcmp.lt.s32.totalorder %v902, 32
    %vm924 = vcmp.lt.s32.totalorder %v903, 32
    %vm925 = vcmp.lt.s32.totalorder %v904, 32
    %vm926 = vcmp.lt.s32.totalorder %v905, 32
    %vm927 = vcmp.lt.s32.totalorder %v906, 32
    %vm928 = vcmp.lt.s32.totalorder %v907, 32
    %vm929 = vcmp.lt.s32.totalorder %v908, 32
    %vm930 = vcmp.lt.s32.totalorder %v909, 32
    %vm931 = vcmp.lt.s32.totalorder %v914, 16
    %vm932 = vmand %vm915, %vm931
    %vm933 = vmand %vm916, %vm931
    %vm934 = vmand %vm917, %vm931
    %vm935 = vmand %vm918, %vm931
    %vm936 = vmand %vm919, %vm931
    %vm937 = vmand %vm920, %vm931
    %vm938 = vmand %vm921, %vm931
    %vm939 = vmand %vm922, %vm931
    %vm940 = vmand %vm923, %vm931
    %vm941 = vmand %vm924, %vm931
    %vm942 = vmand %vm925, %vm931
    %vm943 = vmand %vm926, %vm931
    %vm944 = vmand %vm927, %vm931
    %vm945 = vmand %vm928, %vm931
    %vm946 = vmand %vm929, %vm931
    %vm947 = vmand %vm930, %vm931
    %v948 = vsel %vm932, %v523, 0.0
    %v949 = vsel %vm933, %v524, 0.0
    %v950 = vsel %vm934, %v525, 0.0
    %v951 = vsel %vm935, %v526, 0.0
    %v952 = vsel %vm936, %v527, 0.0
    %v953 = vsel %vm937, %v528, 0.0
    %v954 = vsel %vm938, %v529, 0.0
    %v955 = vsel %vm939, %v530, 0.0
    %v956 = vsel %vm940, %v531, 0.0
    %v957 = vsel %vm941, %v532, 0.0
    %v958 = vsel %vm942, %v533, 0.0
    %v959 = vsel %vm943, %v534, 0.0
    %v960 = vsel %vm944, %v535, 0.0
    %v961 = vsel %vm945, %v536, 0.0
    %v962 = vsel %vm946, %v537, 0.0
    %v963 = vsel %vm947, %v538, 0.0
    %v964 = vsel %vm932, %v859, 0.0
    %v965 = vsel %vm933, %v860, 0.0
    %v966 = vsel %vm934, %v861, 0.0
    %v967 = vsel %vm935, %v862, 0.0
    %v968 = vsel %vm936, %v863, 0.0
    %v969 = vsel %vm937, %v864, 0.0
    %v970 = vsel %vm938, %v865, 0.0
    %v971 = vsel %vm939, %v866, 0.0
    %v972 = vsel %vm940, %v867, 0.0
    %v973 = vsel %vm941, %v868, 0.0
    %v974 = vsel %vm942, %v869, 0.0
    %v975 = vsel %vm943, %v870, 0.0
    %v976 = vsel %vm944, %v871, 0.0
    %v977 = vsel %vm945, %v872, 0.0
    %v978 = vsel %vm946, %v873, 0.0
    %v979 = vsel %vm947, %v874, 0.0
    %v980 = vld [vmem:[#allocation3] sm:$0x1]
    %v981 = vadd.f32 %v948, %v949
    %v982 = vadd.f32 %v981, %v950
    %v983 = vadd.f32 %v982, %v951
    %v984 = vadd.f32 %v983, %v952
    %v985 = vadd.f32 %v984, %v953
    %v986 = vadd.f32 %v985, %v954
    %v987 = vadd.f32 %v986, %v955
    %v988 = vadd.f32 %v987, %v956
    %v989 = vadd.f32 %v988, %v957
    %v990 = vadd.f32 %v989, %v958
    %v991 = vadd.f32 %v990, %v959
    %v992 = vadd.f32 %v991, %v960
    %v993 = vadd.f32 %v992, %v961
    %v994 = vadd.f32 %v993, %v962
    %v995 = vadd.f32 %v994, %v963
    %996 = vadd.xlane.f32.xlu0 %v995
    %v997 = vpop.xlane.xlu0 %996
    %v998 = vrot.slane %v997, 4
    %v999 = vadd.f32 %v997, %v998
    %v1000 = vrot.slane %v999, 2
    %v1001 = vadd.f32 %v999, %v1000
    %v1002 = vrot.slane %v1001, 1
    %v1003 = vadd.f32 %v1001, %v1002
    %s1004 = vtos %v1003
    %v1005 = vstv %s1004
    %v1006 = vadd.f32 %v980, %v1005
    %vm1007 = vcmask 0
    %1008 = vst.msk [vmem:[#allocation3] sm:$0x1] %vm1007, %v1006
    %v1009 = vld [vmem:[#allocation4] sm:$0x1]
    %v1010 = vadd.f32 %v964, %v965
    %v1011 = vadd.f32 %v1010, %v966
    %v1012 = vadd.f32 %v1011, %v967
    %v1013 = vadd.f32 %v1012, %v968
    %v1014 = vadd.f32 %v1013, %v969
    %v1015 = vadd.f32 %v1014, %v970
    %v1016 = vadd.f32 %v1015, %v971
    %v1017 = vadd.f32 %v1016, %v972
    %v1018 = vadd.f32 %v1017, %v973
    %v1019 = vadd.f32 %v1018, %v974
    %v1020 = vadd.f32 %v1019, %v975
    %v1021 = vadd.f32 %v1020, %v976
    %v1022 = vadd.f32 %v1021, %v977
    %v1023 = vadd.f32 %v1022, %v978
    %v1024 = vadd.f32 %v1023, %v979
    %1025 = vadd.xlane.f32.xlu0 %v1024
    %v1026 = vpop.xlane.xlu0 %1025
    %v1027 = vrot.slane %v1026, 4
    %v1028 = vadd.f32 %v1026, %v1027
    %v1029 = vrot.slane %v1028, 2
    %v1030 = vadd.f32 %v1028, %v1029
    %v1031 = vrot.slane %v1030, 1
    %v1032 = vadd.f32 %v1030, %v1031
    %s1033 = vtos %v1032
    %v1034 = vstv %s1033
    %v1035 = vadd.f32 %v1009, %v1034
    %1036 = vst.msk [vmem:[#allocation4] sm:$0x1] %vm1007, %v1035
    // Predicated region
    $region54: #{tpu_custom_call.1} parent=1 // pred_check
      %p1037 = pneg %p85
    $region55: #{tpu_custom_call.1} parent=1 // pred_check_branch
      %1039 = sbr.rel (%p1037) target = $region57
    $region56: #{tpu_custom_call.1} parent=1 // pred_region
      %v1040 = vld [vmem:[%s4] sm:$0x1]
      %v1041 = vld [vmem:[%s5] sm:$0x1]
      %v1042 = vld [vmem:[%s6] sm:$0x1]
      %v1043 = vmul.f32 %v1041, 1.442695
      %v1044 = vpow.pop %v1043
      %v1045 = vadd.f32 %v1044, 1.0
      %v1046 = vlog2.pop %v1045
      %v1047 = vmul.f32 %v1046, 0.6931472
      %v1048 = vmul.f32 -0.5, %v1044
      %v1049 = vadd.f32 %v1048, 1.0
      %v1050 = vmul.f32 %v1049, %v1044
      %v1051 = vand.u32 2147483647, %v1044
      %vm1052 = vcmp.lt.f32.partialorder %v1051, 0.0004427343
      %v1053 = vsel %vm1052, %v1050, %v1047
      %v1054 = vmul.f32 %v1053, %v1042
      %v1055 = vadd.f32 %v1040, %v1054
      %v1056 = vld [vmem:[#allocation2] sm:$0xff]
      %v1058 = vlaneseq
      %v1059 = vshrl.u32 %v1058, 7
      %v1060 = vsub.s32 0, %v1059
      %v1061 = vrot.slane %v1055, %v1060
      %v1063 = vadd.f32 %v1056, %v1061
      %1064 = vst [vmem:[#allocation13] sm:$0xff] %v1063
      %v1065 = vsub.f32 -0.9189385, %v1041
      %v1066 = vmul.f32 %v1054, %v1054
      %v1067 = vmul.f32 %v1044, 2.0
      %v1068 = vmul.f32 %v1067, %v1044
      %v1069 = vrcp.pop %v1068
      %v1070 = vmul.f32 %v1066, %v1069
      %v1071 = vsub.f32 %v1065, %v1070
      %v1072 = vmul.f32 %v1055, %v1055
      %v1073 = vmul.f32 %v1072, 50.0
      %v1074 = vsub.f32 0.69049937, %v1073
      %v1075 = vmul.f32 %v1072, 0.5
      %v1076 = vsub.f32 -1.6120857, %v1075
      %v1077 = vmax.f32 %v1074, %v1076
      %v1078 = vsub.f32 %v1074, %v1076
      %v1079 = vand.u32 2147483647, %v1078
      %v1080 = vsub.f32 0.0, %v1079
      %v1081 = vmul.f32 %v1080, 1.442695
      %v1082 = vpow.pop %v1081
      %v1083 = vadd.f32 %v1082, 1.0
      %v1084 = vlog2.pop %v1083
      %v1085 = vmul.f32 %v1084, 0.6931472
      %v1086 = vmul.f32 -0.5, %v1082
      %v1087 = vadd.f32 %v1086, 1.0
      %v1088 = vmul.f32 %v1087, %v1082
      %v1089 = vand.u32 2147483647, %v1082
      %vm1090 = vcmp.lt.f32.partialorder %v1089, 0.0004427343
      %v1091 = vsel %vm1090, %v1088, %v1085
      %v1092 = vadd.f32 %v1077, %v1091
      %v1093 = vsel %vm931, %v1071, 0.0
      %v1094 = vsel %vm931, %v1092, 0.0
      %v1095 = vld [vmem:[#allocation3] sm:$0x1]
      %vm1096 = vcmask 1040384
      %v1097 = vsel %vm1096, %v1093, 0.0
      %1098 = vadd.xlane.f32.xlu0 %v1097
      %v1099 = vpop.xlane.xlu0 %1098
      %v1100 = vrot.slane %v1099, 4
      %v1101 = vadd.f32 %v1099, %v1100
      %v1102 = vrot.slane %v1101, 2
      %v1103 = vadd.f32 %v1101, %v1102
      %v1104 = vrot.slane %v1103, 1
      %v1105 = vadd.f32 %v1103, %v1104
      %s1106 = vtos %v1105
      %v1107 = vstv %s1106
      %v1108 = vadd.f32 %v1095, %v1107
      %1109 = vst.msk [vmem:[#allocation3] sm:$0x1] %vm1007, %v1108
      %v1110 = vld [vmem:[#allocation4] sm:$0x1]
      %v1111 = vsel %vm1096, %v1094, 0.0
      %1112 = vadd.xlane.f32.xlu0 %v1111
      %v1113 = vpop.xlane.xlu0 %1112
      %v1114 = vrot.slane %v1113, 4
      %v1115 = vadd.f32 %v1113, %v1114
      %v1116 = vrot.slane %v1115, 2
      %v1117 = vadd.f32 %v1115, %v1116
      %v1118 = vrot.slane %v1117, 1
      %v1119 = vadd.f32 %v1117, %v1118
      %s1120 = vtos %v1119
      %v1121 = vstv %s1120
      %v1122 = vadd.f32 %v1110, %v1121
      %1123 = vst.msk [vmem:[#allocation4] sm:$0x1] %vm1007, %v1122
    $region57: #{tpu_custom_call.1} parent=1 // pred_fallthru
      _
    // Predicated region
    $region58: #{tpu_custom_call.1} parent=1 // pred_check
      _
    $region59: #{tpu_custom_call.1} parent=1 // pred_check_branch
      %1125 = sbr.rel (%p86) target = $region61
    $region60: #{tpu_custom_call.1} parent=1 // pred_region
      %v1126 = vld [vmem:[#allocation3] sm:$0x1]
      %1127 = vst.msk [vmem:[#allocation14] sm:$0x1] %vm1007, %v1126
      %v1128 = vld [vmem:[#allocation4] sm:$0x1]
      %1129 = vst.msk [vmem:[#allocation16] sm:$0x1] %vm1007, %v1128
    $region61: #{tpu_custom_call.1} parent=1 // pred_fallthru
      _
    // Predicated region
    $region62: #{tpu_custom_call.1} parent=1 // pred_check
      _
    $region63: #{tpu_custom_call.1} parent=1 // pred_check_branch
      %1131 = sbr.rel (0) target = $region65
    $region64: #{tpu_custom_call.1} parent=1 // pred_region
      %s1133 = ssub.s32 128, 128
      %1134 = vsyncadd [#allocation7], %s1133
      %s1136 = sshll.u32 [#allocation13], 4
      %s1137 = int_to_ptr.vmem [resolvable:$true] %s1136
      %1139 = dma.vmem_to_hbm [thread:$0]  %s1137, 128, %s7, [#allocation7]
    $region65: #{tpu_custom_call.1} parent=1 // pred_fallthru
      _
    // Predicated region
    $region66: #{tpu_custom_call.1} parent=1 // pred_check
      _
    $region67: #{tpu_custom_call.1} parent=1 // pred_check_branch
      %1141 = sbr.rel (0) target = $region69
    $region68: #{tpu_custom_call.1} parent=1 // pred_region
      %s1143 = ssub.s32 16, 16
      %1144 = vsyncadd [#allocation15], %s1143
      %s1146 = sshll.u32 [#allocation14], 4
      %s1147 = int_to_ptr.vmem [resolvable:$true] %s1146
      %1149 = dma.vmem_to_hbm [thread:$0]  %s1147, 16, %s8, [#allocation15]
    $region69: #{tpu_custom_call.1} parent=1 // pred_fallthru
      _
    // Predicated region
    $region70: #{tpu_custom_call.1} parent=1 // pred_check
      _
    $region71: #{tpu_custom_call.1} parent=1 // pred_check_branch
      %1151 = sbr.rel (0) target = $region73
    $region72: #{tpu_custom_call.1} parent=1 // pred_region
      %s1153 = ssub.s32 16, 16
      %1154 = vsyncadd [#allocation15], %s1153
      %s1156 = sshll.u32 [#allocation16], 4
      %s1157 = int_to_ptr.vmem [resolvable:$true] %s1156
      %1159 = dma.vmem_to_hbm [thread:$0]  %s1157, 16, %s9, [#allocation15]
    $region73: #{tpu_custom_call.1} parent=1 // pred_fallthru
      _
    // Predicated region
    $region74: #{tpu_custom_call.1} parent=1 // pred_check
      _
    $region75: #{tpu_custom_call.1} parent=1 // pred_check_branch
      %1161 = sbr.rel (0) target = $region77
    $region76: #{tpu_custom_call.1} parent=1 // pred_region
      %1162 = dma.done [#allocation7], 128
    $region77: #{tpu_custom_call.1} parent=1 // pred_fallthru
      _
    // Predicated region
    $region78: #{tpu_custom_call.1} parent=1 // pred_check
      _
    $region79: #{tpu_custom_call.1} parent=1 // pred_check_branch
      %1164 = sbr.rel (0) target = $region81
    $region80: #{tpu_custom_call.1} parent=1 // pred_region
      %1165 = dma.done [#allocation15], 16
    $region81: #{tpu_custom_call.1} parent=1 // pred_fallthru
      _
    // Predicated region
    $region82: #{tpu_custom_call.1} parent=1 // pred_check
      _
    $region83: #{tpu_custom_call.1} parent=1 // pred_check_branch
      %1167 = sbr.rel (0) target = $region85
    $region84: #{tpu_custom_call.1} parent=1 // pred_region
      %1168 = dma.done [#allocation15], 16
    $region85: #{tpu_custom_call.1} parent=1 // pred_fallthru
      _
    %1169 = vsyncpa [#allocation6], 1
    %1170 = vsyncpa [#allocation9], 1
    %1171 = vsyncpa [#allocation12], 1
    %1172 = vsyncpa [#allocation7], 1
    %1173 = vsyncpa [#allocation15], 1

</llo_original>
